<compile_context>
chip_gen: v5e
topology: v5e:2x2
jax: 0.10.0
libtpu: 0.0.40
codegen_flags: <defaults>
</compile_context>

<pallas_src>
import functools

import jax
import jax.numpy as jnp
from jax.experimental import pallas as pl
from jax.experimental.pallas import tpu as pltpu


# ---------------------------------------------------------------------------
# Pallas kernel: one bidirectional LSTM layer over the whole sequence.
# x is time-major and flattened to rows: row index = t * B + b.
# ---------------------------------------------------------------------------
def _bilstm_layer_kernel(x_ref, wihf_ref, wihb_ref, whhf_ref, whhb_ref,
                         bf_ref, bb_ref, out_ref, gxf_ref, gxb_ref,
                         *, seq_len, batch, hidden, mxu_dtype):
    T, B, H = seq_len, batch, hidden

    # ---- Hoisted input projection: one big MXU matmul per direction --------
    x = x_ref[...].astype(mxu_dtype)                      # (T*B, D)
    gxf_ref[...] = (jnp.dot(x, wihf_ref[...], preferred_element_type=jnp.float32)
                    + bf_ref[...])
    gxb_ref[...] = (jnp.dot(x, wihb_ref[...], preferred_element_type=jnp.float32)
                    + bb_ref[...])

    whh_f = whhf_ref[...]                                 # (H, 4H)
    whh_b = whhb_ref[...]

    # Packed activation mask (built once, outside the loop).
    # Gate order [i, f, g, o]; g gets tanh, the rest sigmoid = 0.5*(1+tanh(x/2)).
    lane = jax.lax.broadcasted_iota(jnp.int32, (B, 4 * H), 1)
    is_g = jnp.logical_and(lane >= 2 * H, lane < 3 * H)
    pre_scale = jnp.where(is_g, jnp.float32(1.0), jnp.float32(0.5))

    def cell(gx_row, h_prev, c_prev, whh):
        # Only the recurrent half stays in the serial loop.
        gates = gx_row + jnp.dot(h_prev.astype(mxu_dtype), whh,
                                 preferred_element_type=jnp.float32)
        th = jnp.tanh(gates * pre_scale)                  # one EUP launch
        act = jnp.where(is_g, th, 0.5 * (1.0 + th))
        i_g = act[:, 0 * H:1 * H]
        f_g = act[:, 1 * H:2 * H]
        g_g = act[:, 2 * H:3 * H]
        o_g = act[:, 3 * H:4 * H]
        c_new = f_g * c_prev + i_g * g_g
        h_new = o_g * jnp.tanh(c_new)
        return h_new, c_new

    def step(t, carry):
        h_f, c_f, h_b, c_b = carry
        rf = pl.multiple_of(t * B, B)                     # fwd rows (time t)
        rb = pl.multiple_of((T - 1 - t) * B, B)           # bwd rows (time T-1-t)
        h_f, c_f = cell(gxf_ref[pl.ds(rf, B), :], h_f, c_f, whh_f)
        h_b, c_b = cell(gxb_ref[pl.ds(rb, B), :], h_b, c_b, whh_b)
        out_ref[pl.ds(rf, B), 0:H] = h_f                  # forward half
        out_ref[pl.ds(rb, B), H:2 * H] = h_b              # backward half
        return (h_f, c_f, h_b, c_b)

    z = jnp.zeros((B, H), jnp.float32)
    jax.lax.fori_loop(0, T, step, (z, z, z, z), unroll=True)


def _bilstm_layer(x_flat, p, T, B, H, mxu_dtype):
    """One bidirectional layer. x_flat: (T*B, D) time-major rows -> (T*B, 2H)."""
    TB, D = x_flat.shape
    wih_f = jnp.transpose(p["w_ih_f"]).astype(mxu_dtype)          # (D, 4H)
    wih_b = jnp.transpose(p["w_ih_b"]).astype(mxu_dtype)
    whh_f = jnp.transpose(p["w_hh_f"]).astype(mxu_dtype)          # (H, 4H)
    whh_b = jnp.transpose(p["w_hh_b"]).astype(mxu_dtype)
    bias_f = (p["b_ih_f"] + p["b_hh_f"]).reshape(1, 4 * H).astype(jnp.float32)
    bias_b = (p["b_ih_b"] + p["b_hh_b"]).reshape(1, 4 * H).astype(jnp.float32)

    kernel = functools.partial(_bilstm_layer_kernel, seq_len=T, batch=B,
                               hidden=H, mxu_dtype=mxu_dtype)

    # Single grid step covering the whole (small) sequence; at realistic T this
    # would become a time-chunked grid with the same inner loop.
    # TODO(synk): on v7x, the two directions could be split across the 2 TCs.
    out = pl.pallas_call(
        kernel,
        out_shape=jax.ShapeDtypeStruct((TB, 2 * H), jnp.float32),
        grid_spec=pltpu.PrefetchScalarGridSpec(
            num_scalar_prefetch=0,
            grid=(1,),
            in_specs=[
                pl.BlockSpec((TB, D), lambda i: (0, 0)),          # x (shared)
                pl.BlockSpec((D, 4 * H), lambda i: (0, 0)),       # W_ih fwd
                pl.BlockSpec((D, 4 * H), lambda i: (0, 0)),       # W_ih bwd
                pl.BlockSpec((H, 4 * H), lambda i: (0, 0)),       # W_hh fwd
                pl.BlockSpec((H, 4 * H), lambda i: (0, 0)),       # W_hh bwd
                pl.BlockSpec((1, 4 * H), lambda i: (0, 0)),       # bias fwd
                pl.BlockSpec((1, 4 * H), lambda i: (0, 0)),       # bias bwd
            ],
            out_specs=pl.BlockSpec((TB, 2 * H), lambda i: (0, 0)),
            scratch_shapes=[
                pltpu.VMEM((TB, 4 * H), jnp.float32),   # gates_x fwd (all t)
                pltpu.VMEM((TB, 4 * H), jnp.float32),   # gates_x bwd (all t)
            ],
        ),
        compiler_params=pltpu.CompilerParams(
            dimension_semantics=("arbitrary",)),   # sequential recurrence
    )(x_flat, wih_f, wih_b, whh_f, whh_b, bias_f, bias_b)
    return out


def bilstm_block_forward(x, params, hidden_dim, num_layers=2,
                         matmul_dtype=jnp.float32):
    """x: (B, T, input_dim) batch_first, like PyTorch. Returns (B, T, 2*hidden)."""
    B, T, D = x.shape
    Bp = ((B + 7) // 8) * 8                       # pad batch to sublane multiple
    if Bp != B:
        x = jnp.pad(x, ((0, Bp - B), (0, 0), (0, 0)))
    x_flat = jnp.transpose(x, (1, 0, 2)).reshape(T * Bp, D)   # time-major rows
    for layer in range(num_layers):
        x_flat = _bilstm_layer(x_flat, params[layer], T, Bp, hidden_dim,
                               matmul_dtype)
        # TODO(synk): inter-layer dropout (p=0.4) is training-only; eval no-op.
    out = x_flat.reshape(T, Bp, 2 * hidden_dim)[:, :B]
    return jnp.transpose(out, (1, 0, 2))


# ---------------------------------------------------------------------------
# Deterministic parameter init (same shapes as nn.LSTM, bidirectional=True)
# ---------------------------------------------------------------------------
def init_params(key, input_dim, hidden_dim, num_layers=2):
    params = []
    bound = 1.0 / jnp.sqrt(hidden_dim)
    for layer in range(num_layers):
        in_dim = input_dim if layer == 0 else 2 * hidden_dim
        layer_p = {}
        for direction in ("f", "b"):
            key, k1, k2, k3, k4 = jax.random.split(key, 5)
            layer_p[f"w_ih_{direction}"] = jax.random.uniform(
                k1, (4 * hidden_dim, in_dim), jnp.float32, -bound, bound)
            layer_p[f"w_hh_{direction}"] = jax.random.uniform(
                k2, (4 * hidden_dim, hidden_dim), jnp.float32, -bound, bound)
            layer_p[f"b_ih_{direction}"] = jax.random.uniform(
                k3, (4 * hidden_dim,), jnp.float32, -bound, bound)
            layer_p[f"b_hh_{direction}"] = jax.random.uniform(
                k4, (4 * hidden_dim,), jnp.float32, -bound, bound)
        params.append(layer_p)
    return params


# ---------------------------------------------------------------------------
# Pure-JAX reference (lax.scan) for correctness check
# ---------------------------------------------------------------------------
def _ref_direction(x_tm, w_ih, w_hh, b_ih, b_hh, H):
    B = x_tm.shape[1]
    wih_t, whh_t = w_ih.T, w_hh.T
    bias = b_ih + b_hh

    def step(carry, x_t):
        h, c = carry
        gates = x_t @ wih_t + h @ whh_t + bias
        i = jax.nn.sigmoid(gates[:, 0 * H:1 * H])
        f = jax.nn.sigmoid(gates[:, 1 * H:2 * H])
        g = jnp.tanh(gates[:, 2 * H:3 * H])
        o = jax.nn.sigmoid(gates[:, 3 * H:4 * H])
        c = f * c + i * g
        h = o * jnp.tanh(c)
        return (h, c), h

    init = (jnp.zeros((B, H)), jnp.zeros((B, H)))
    _, hs = jax.lax.scan(step, init, x_tm)
    return hs


def bilstm_reference(x, params, hidden_dim, num_layers=2):
    x_tm = jnp.transpose(x, (1, 0, 2))
    for layer in range(num_layers):
        p = params[layer]
        fwd = _ref_direction(x_tm, p["w_ih_f"], p["w_hh_f"], p["b_ih_f"],
                             p["b_hh_f"], hidden_dim)
        bwd = jnp.flip(_ref_direction(jnp.flip(x_tm, axis=0), p["w_ih_b"],
                                      p["w_hh_b"], p["b_ih_b"], p["b_hh_b"],
                                      hidden_dim), axis=0)
        x_tm = jnp.concatenate([fwd, bwd], axis=-1)
    return jnp.transpose(x_tm, (1, 0, 2))


if __name__ == "__main__":
    B, T, INPUT_DIM, HIDDEN_DIM = 2, 8, 16, 32

    key = jax.random.PRNGKey(0)
    kx, kp = jax.random.split(key)
    x = jax.random.normal(kx, (B, T, INPUT_DIM), jnp.float32)
    params = init_params(kp, INPUT_DIM, HIDDEN_DIM, num_layers=2)

    ref = jax.block_until_ready(bilstm_reference(x, params, HIDDEN_DIM, num_layers=2))

    # f32 matmuls: strict check against the pure-JAX reference.
    out = jax.block_until_ready(
        bilstm_block_forward(x, params, HIDDEN_DIM, num_layers=2))
    assert out.shape == (B, T, 2 * HIDDEN_DIM), out.shape
    err = float(jnp.max(jnp.abs(out - ref)))
    assert err < 1e-4, err

    # bf16 matmul operands (v6e/v7x fast path), f32 accumulation / gate math.
    out_bf16 = jax.block_until_ready(
        bilstm_block_forward(x, params, HIDDEN_DIM, num_layers=2,
                             matmul_dtype=jnp.bfloat16))
    err_bf16 = float(jnp.max(jnp.abs(out_bf16 - ref)))
    assert err_bf16 < 1e-1, err_bf16

    print("KERNEL_OK")
</pallas_src>

<mosaic_0001>
module attributes {stable_mosaic.version = 11 : i64} {
  func.func @_bilstm_layer_kernel(%arg0: i32, %arg1: memref<64x16xf32, #tpu.memory_space<vmem>>, %arg2: memref<16x128xf32, #tpu.memory_space<vmem>>, %arg3: memref<16x128xf32, #tpu.memory_space<vmem>>, %arg4: memref<32x128xf32, #tpu.memory_space<vmem>>, %arg5: memref<32x128xf32, #tpu.memory_space<vmem>>, %arg6: memref<1x128xf32, #tpu.memory_space<vmem>>, %arg7: memref<1x128xf32, #tpu.memory_space<vmem>>, %arg8: memref<64x64xf32, #tpu.memory_space<vmem>>, %arg9: memref<64x128xf32, #tpu.memory_space<vmem>>, %arg10: memref<64x128xf32, #tpu.memory_space<vmem>>) attributes {dimension_semantics = [#tpu.dimension_semantics<arbitrary>], iteration_bounds = array<i64: 1>, scalar_prefetch = 0 : i64, scratch_operands = 2 : i64, tpu.core_type = #tpu.core_type<tc>, window_params = [{pipeline_mode = #tpu.pipeline_mode<synchronous>, transform_indices = @transform_0, window_bounds = array<i64: 64, 16>}, {pipeline_mode = #tpu.pipeline_mode<synchronous>, transform_indices = @transform_1, window_bounds = array<i64: 16, 128>}, {pipeline_mode = #tpu.pipeline_mode<synchronous>, transform_indices = @transform_2, window_bounds = array<i64: 16, 128>}, {pipeline_mode = #tpu.pipeline_mode<synchronous>, transform_indices = @transform_3, window_bounds = array<i64: 32, 128>}, {pipeline_mode = #tpu.pipeline_mode<synchronous>, transform_indices = @transform_4, window_bounds = array<i64: 32, 128>}, {pipeline_mode = #tpu.pipeline_mode<synchronous>, transform_indices = @transform_5, window_bounds = array<i64: 1, 128>}, {pipeline_mode = #tpu.pipeline_mode<synchronous>, transform_indices = @transform_6, window_bounds = array<i64: 1, 128>}, {pipeline_mode = #tpu.pipeline_mode<synchronous>, transform_indices = @transform_7, window_bounds = array<i64: 64, 64>}]} {
    %c0 = arith.constant 0 : index
    %c0_0 = arith.constant 0 : index
    %0 = vector.load %arg1[%c0, %c0_0] : memref<64x16xf32, #tpu.memory_space<vmem>>, vector<64x16xf32>
    %c0_1 = arith.constant 0 : index
    %c0_2 = arith.constant 0 : index
    %1 = vector.load %arg2[%c0_1, %c0_2] : memref<16x128xf32, #tpu.memory_space<vmem>>, vector<16x128xf32>
    %cst = arith.constant dense<0.000000e+00> : vector<64x128xf32>
    %2 = tpu.matmul %0, %1, %cst {dimension_numbers = #tpu.dot_dimension_numbers<[1], [0], [0], [1], [0, 0, 1, 1], [], []>} : vector<64x16xf32>, vector<16x128xf32>, vector<64x128xf32> -> vector<64x128xf32>
    %c0_3 = arith.constant 0 : index
    %c0_4 = arith.constant 0 : index
    %3 = vector.load %arg6[%c0_3, %c0_4] : memref<1x128xf32, #tpu.memory_space<vmem>>, vector<1x128xf32>
    %4 = vector.broadcast %3 : vector<1x128xf32> to vector<64x128xf32>
    %5 = arith.addf %2, %4 : vector<64x128xf32>
    %c0_5 = arith.constant 0 : index
    %c0_6 = arith.constant 0 : index
    %6 = vector.load %arg9[%c0_5, %c0_6] : memref<64x128xf32, #tpu.memory_space<vmem>>, vector<64x128xf32>
    tpu.vector_store %arg9[%c0_5, %c0_6], %5 {strides = array<i32>} : memref<64x128xf32, #tpu.memory_space<vmem>>, vector<64x128xf32>,
    %c0_7 = arith.constant 0 : index
    %c0_8 = arith.constant 0 : index
    %7 = vector.load %arg3[%c0_7, %c0_8] : memref<16x128xf32, #tpu.memory_space<vmem>>, vector<16x128xf32>
    %cst_9 = arith.constant dense<0.000000e+00> : vector<64x128xf32>
    %8 = tpu.matmul %0, %7, %cst_9 {dimension_numbers = #tpu.dot_dimension_numbers<[1], [0], [0], [1], [0, 0, 1, 1], [], []>} : vector<64x16xf32>, vector<16x128xf32>, vector<64x128xf32> -> vector<64x128xf32>
    %c0_10 = arith.constant 0 : index
    %c0_11 = arith.constant 0 : index
    %9 = vector.load %arg7[%c0_10, %c0_11] : memref<1x128xf32, #tpu.memory_space<vmem>>, vector<1x128xf32>
    %10 = vector.broadcast %9 : vector<1x128xf32> to vector<64x128xf32>
    %11 = arith.addf %8, %10 : vector<64x128xf32>
    %c0_12 = arith.constant 0 : index
    %c0_13 = arith.constant 0 : index
    %12 = vector.load %arg10[%c0_12, %c0_13] : memref<64x128xf32, #tpu.memory_space<vmem>>, vector<64x128xf32>
    tpu.vector_store %arg10[%c0_12, %c0_13], %11 {strides = array<i32>} : memref<64x128xf32, #tpu.memory_space<vmem>>, vector<64x128xf32>,
    %c0_14 = arith.constant 0 : index
    %c0_15 = arith.constant 0 : index
    %13 = vector.load %arg4[%c0_14, %c0_15] : memref<32x128xf32, #tpu.memory_space<vmem>>, vector<32x128xf32>
    %c0_16 = arith.constant 0 : index
    %c0_17 = arith.constant 0 : index
    %14 = vector.load %arg5[%c0_16, %c0_17] : memref<32x128xf32, #tpu.memory_space<vmem>>, vector<32x128xf32>
    %15 = tpu.iota {dimensions = array<i32: 1>} : vector<8x128xi32>
    %c64_i32 = arith.constant 64 : i32
    %16 = vector.broadcast %c64_i32 : i32 to vector<8x128xi32>
    %17 = arith.cmpi sge, %15, %16 : vector<8x128xi32>
    %c96_i32 = arith.constant 96 : i32
    %18 = vector.broadcast %c96_i32 : i32 to vector<8x128xi32>
    %19 = arith.cmpi slt, %15, %18 : vector<8x128xi32>
    %20 = arith.andi %17, %19 : vector<8x128xi1>
    %cst_18 = arith.constant 1.000000e+00 : f32
    %cst_19 = arith.constant 5.000000e-01 : f32
    %21 = vector.broadcast %cst_18 : f32 to vector<8x128xf32>
    %22 = vector.broadcast %cst_19 : f32 to vector<8x128xf32>
    %23 = arith.select %20, %21, %22 : vector<8x128xi1>, vector<8x128xf32>
    %cst_20 = arith.constant 0.000000e+00 : f32
    %24 = vector.broadcast %cst_20 : f32 to vector<8x32xf32>
    %c0_i32 = arith.constant 0 : i32
    %c8_i32 = arith.constant 8 : i32
    %25 = arith.muli %c0_i32, %c8_i32 : i32
    %26 = tpu.assume_multiple %25, 8 : i32
    %c7_i32 = arith.constant 7 : i32
    %27 = arith.subi %c7_i32, %c0_i32 : i32
    %c8_i32_21 = arith.constant 8 : i32
    %28 = arith.muli %27, %c8_i32_21 : i32
    %29 = tpu.assume_multiple %28, 8 : i32
    %30 = arith.index_cast %26 : i32 to index
    %c0_22 = arith.constant 0 : index
    %31 = vector.load %arg9[%30, %c0_22] : memref<64x128xf32, #tpu.memory_space<vmem>>, vector<8x128xf32>
    %cst_23 = arith.constant dense<0.000000e+00> : vector<8x128xf32>
    %32 = tpu.matmul %24, %13, %cst_23 {dimension_numbers = #tpu.dot_dimension_numbers<[1], [0], [0], [1], [0, 0, 1, 1], [], []>} : vector<8x32xf32>, vector<32x128xf32>, vector<8x128xf32> -> vector<8x128xf32>
    %33 = arith.addf %31, %32 : vector<8x128xf32>
    %34 = arith.mulf %33, %23 : vector<8x128xf32>
    %35 = math.tanh %34 : vector<8x128xf32>
    %cst_24 = arith.constant 1.000000e+00 : f32
    %36 = vector.broadcast %cst_24 : f32 to vector<8x128xf32>
    %37 = arith.addf %36, %35 : vector<8x128xf32>
    %cst_25 = arith.constant 5.000000e-01 : f32
    %38 = vector.broadcast %cst_25 : f32 to vector<8x128xf32>
    %39 = arith.mulf %38, %37 : vector<8x128xf32>
    %40 = arith.select %20, %35, %39 : vector<8x128xi1>, vector<8x128xf32>
    %41 = vector.extract_strided_slice %40 {offsets = [0, 0], sizes = [8, 32], strides = [1, 1]} : vector<8x128xf32> to vector<8x32xf32>
    %42 = vector.extract_strided_slice %40 {offsets = [0, 32], sizes = [8, 32], strides = [1, 1]} : vector<8x128xf32> to vector<8x32xf32>
    %43 = vector.extract_strided_slice %40 {offsets = [0, 64], sizes = [8, 32], strides = [1, 1]} : vector<8x128xf32> to vector<8x32xf32>
    %44 = vector.extract_strided_slice %40 {offsets = [0, 96], sizes = [8, 32], strides = [1, 1]} : vector<8x128xf32> to vector<8x32xf32>
    %45 = arith.mulf %42, %24 : vector<8x32xf32>
    %46 = arith.mulf %41, %43 : vector<8x32xf32>
    %47 = arith.addf %45, %46 : vector<8x32xf32>
    %48 = math.tanh %47 : vector<8x32xf32>
    %49 = arith.mulf %44, %48 : vector<8x32xf32>
    %50 = arith.index_cast %29 : i32 to index
    %c0_26 = arith.constant 0 : index
    %51 = vector.load %arg10[%50, %c0_26] : memref<64x128xf32, #tpu.memory_space<vmem>>, vector<8x128xf32>
    %cst_27 = arith.constant dense<0.000000e+00> : vector<8x128xf32>
    %52 = tpu.matmul %24, %14, %cst_27 {dimension_numbers = #tpu.dot_dimension_numbers<[1], [0], [0], [1], [0, 0, 1, 1], [], []>} : vector<8x32xf32>, vector<32x128xf32>, vector<8x128xf32> -> vector<8x128xf32>
    %53 = arith.addf %51, %52 : vector<8x128xf32>
    %54 = arith.mulf %53, %23 : vector<8x128xf32>
    %55 = math.tanh %54 : vector<8x128xf32>
    %cst_28 = arith.constant 1.000000e+00 : f32
    %56 = vector.broadcast %cst_28 : f32 to vector<8x128xf32>
    %57 = arith.addf %56, %55 : vector<8x128xf32>
    %cst_29 = arith.constant 5.000000e-01 : f32
    %58 = vector.broadcast %cst_29 : f32 to vector<8x128xf32>
    %59 = arith.mulf %58, %57 : vector<8x128xf32>
    %60 = arith.select %20, %55, %59 : vector<8x128xi1>, vector<8x128xf32>
    %61 = vector.extract_strided_slice %60 {offsets = [0, 0], sizes = [8, 32], strides = [1, 1]} : vector<8x128xf32> to vector<8x32xf32>
    %62 = vector.extract_strided_slice %60 {offsets = [0, 32], sizes = [8, 32], strides = [1, 1]} : vector<8x128xf32> to vector<8x32xf32>
    %63 = vector.extract_strided_slice %60 {offsets = [0, 64], sizes = [8, 32], strides = [1, 1]} : vector<8x128xf32> to vector<8x32xf32>
    %64 = vector.extract_strided_slice %60 {offsets = [0, 96], sizes = [8, 32], strides = [1, 1]} : vector<8x128xf32> to vector<8x32xf32>
    %65 = arith.mulf %62, %24 : vector<8x32xf32>
    %66 = arith.mulf %61, %63 : vector<8x32xf32>
    %67 = arith.addf %65, %66 : vector<8x32xf32>
    %68 = math.tanh %67 : vector<8x32xf32>
    %69 = arith.mulf %64, %68 : vector<8x32xf32>
    %70 = arith.index_cast %26 : i32 to index
    %c0_30 = arith.constant 0 : index
    %71 = vector.load %arg8[%70, %c0_30] : memref<64x64xf32, #tpu.memory_space<vmem>>, vector<8x32xf32>
    tpu.vector_store %arg8[%70, %c0_30], %49 {strides = array<i32>} : memref<64x64xf32, #tpu.memory_space<vmem>>, vector<8x32xf32>,
    %72 = arith.index_cast %29 : i32 to index
    %c32 = arith.constant 32 : index
    %73 = vector.load %arg8[%72, %c32] : memref<64x64xf32, #tpu.memory_space<vmem>>, vector<8x32xf32>
    tpu.vector_store %arg8[%72, %c32], %69 {strides = array<i32>} : memref<64x64xf32, #tpu.memory_space<vmem>>, vector<8x32xf32>,
    %c1_i32 = arith.constant 1 : i32
    %c8_i32_31 = arith.constant 8 : i32
    %74 = arith.muli %c1_i32, %c8_i32_31 : i32
    %75 = tpu.assume_multiple %74, 8 : i32
    %c7_i32_32 = arith.constant 7 : i32
    %76 = arith.subi %c7_i32_32, %c1_i32 : i32
    %c8_i32_33 = arith.constant 8 : i32
    %77 = arith.muli %76, %c8_i32_33 : i32
    %78 = tpu.assume_multiple %77, 8 : i32
    %79 = arith.index_cast %75 : i32 to index
    %c0_34 = arith.constant 0 : index
    %80 = vector.load %arg9[%79, %c0_34] : memref<64x128xf32, #tpu.memory_space<vmem>>, vector<8x128xf32>
    %cst_35 = arith.constant dense<0.000000e+00> : vector<8x128xf32>
    %81 = tpu.matmul %49, %13, %cst_35 {dimension_numbers = #tpu.dot_dimension_numbers<[1], [0], [0], [1], [0, 0, 1, 1], [], []>} : vector<8x32xf32>, vector<32x128xf32>, vector<8x128xf32> -> vector<8x128xf32>
    %82 = arith.addf %80, %81 : vector<8x128xf32>
    %83 = arith.mulf %82, %23 : vector<8x128xf32>
    %84 = math.tanh %83 : vector<8x128xf32>
    %cst_36 = arith.constant 1.000000e+00 : f32
    %85 = vector.broadcast %cst_36 : f32 to vector<8x128xf32>
    %86 = arith.addf %85, %84 : vector<8x128xf32>
    %cst_37 = arith.constant 5.000000e-01 : f32
    %87 = vector.broadcast %cst_37 : f32 to vector<8x128xf32>
    %88 = arith.mulf %87, %86 : vector<8x128xf32>
    %89 = arith.select %20, %84, %88 : vector<8x128xi1>, vector<8x128xf32>
    %90 = vector.extract_strided_slice %89 {offsets = [0, 0], sizes = [8, 32], strides = [1, 1]} : vector<8x128xf32> to vector<8x32xf32>
    %91 = vector.extract_strided_slice %89 {offsets = [0, 32], sizes = [8, 32], strides = [1, 1]} : vector<8x128xf32> to vector<8x32xf32>
    %92 = vector.extract_strided_slice %89 {offsets = [0, 64], sizes = [8, 32], strides = [1, 1]} : vector<8x128xf32> to vector<8x32xf32>
    %93 = vector.extract_strided_slice %89 {offsets = [0, 96], sizes = [8, 32], strides = [1, 1]} : vector<8x128xf32> to vector<8x32xf32>
    %94 = arith.mulf %91, %47 : vector<8x32xf32>
    %95 = arith.mulf %90, %92 : vector<8x32xf32>
    %96 = arith.addf %94, %95 : vector<8x32xf32>
    %97 = math.tanh %96 : vector<8x32xf32>
    %98 = arith.mulf %93, %97 : vector<8x32xf32>
    %99 = arith.index_cast %78 : i32 to index
    %c0_38 = arith.constant 0 : index
    %100 = vector.load %arg10[%99, %c0_38] : memref<64x128xf32, #tpu.memory_space<vmem>>, vector<8x128xf32>
    %cst_39 = arith.constant dense<0.000000e+00> : vector<8x128xf32>
    %101 = tpu.matmul %69, %14, %cst_39 {dimension_numbers = #tpu.dot_dimension_numbers<[1], [0], [0], [1], [0, 0, 1, 1], [], []>} : vector<8x32xf32>, vector<32x128xf32>, vector<8x128xf32> -> vector<8x128xf32>
    %102 = arith.addf %100, %101 : vector<8x128xf32>
    %103 = arith.mulf %102, %23 : vector<8x128xf32>
    %104 = math.tanh %103 : vector<8x128xf32>
    %cst_40 = arith.constant 1.000000e+00 : f32
    %105 = vector.broadcast %cst_40 : f32 to vector<8x128xf32>
    %106 = arith.addf %105, %104 : vector<8x128xf32>
    %cst_41 = arith.constant 5.000000e-01 : f32
    %107 = vector.broadcast %cst_41 : f32 to vector<8x128xf32>
    %108 = arith.mulf %107, %106 : vector<8x128xf32>
    %109 = arith.select %20, %104, %108 : vector<8x128xi1>, vector<8x128xf32>
    %110 = vector.extract_strided_slice %109 {offsets = [0, 0], sizes = [8, 32], strides = [1, 1]} : vector<8x128xf32> to vector<8x32xf32>
    %111 = vector.extract_strided_slice %109 {offsets = [0, 32], sizes = [8, 32], strides = [1, 1]} : vector<8x128xf32> to vector<8x32xf32>
    %112 = vector.extract_strided_slice %109 {offsets = [0, 64], sizes = [8, 32], strides = [1, 1]} : vector<8x128xf32> to vector<8x32xf32>
    %113 = vector.extract_strided_slice %109 {offsets = [0, 96], sizes = [8, 32], strides = [1, 1]} : vector<8x128xf32> to vector<8x32xf32>
    %114 = arith.mulf %111, %67 : vector<8x32xf32>
    %115 = arith.mulf %110, %112 : vector<8x32xf32>
    %116 = arith.addf %114, %115 : vector<8x32xf32>
    %117 = math.tanh %116 : vector<8x32xf32>
    %118 = arith.mulf %113, %117 : vector<8x32xf32>
    %119 = arith.index_cast %75 : i32 to index
    %c0_42 = arith.constant 0 : index
    %120 = vector.load %arg8[%119, %c0_42] : memref<64x64xf32, #tpu.memory_space<vmem>>, vector<8x32xf32>
    tpu.vector_store %arg8[%119, %c0_42], %98 {strides = array<i32>} : memref<64x64xf32, #tpu.memory_space<vmem>>, vector<8x32xf32>,
    %121 = arith.index_cast %78 : i32 to index
    %c32_43 = arith.constant 32 : index
    %122 = vector.load %arg8[%121, %c32_43] : memref<64x64xf32, #tpu.memory_space<vmem>>, vector<8x32xf32>
    tpu.vector_store %arg8[%121, %c32_43], %118 {strides = array<i32>} : memref<64x64xf32, #tpu.memory_space<vmem>>, vector<8x32xf32>,
    %c2_i32 = arith.constant 2 : i32
    %c8_i32_44 = arith.constant 8 : i32
    %123 = arith.muli %c2_i32, %c8_i32_44 : i32
    %124 = tpu.assume_multiple %123, 8 : i32
    %c7_i32_45 = arith.constant 7 : i32
    %125 = arith.subi %c7_i32_45, %c2_i32 : i32
    %c8_i32_46 = arith.constant 8 : i32
    %126 = arith.muli %125, %c8_i32_46 : i32
    %127 = tpu.assume_multiple %126, 8 : i32
    %128 = arith.index_cast %124 : i32 to index
    %c0_47 = arith.constant 0 : index
    %129 = vector.load %arg9[%128, %c0_47] : memref<64x128xf32, #tpu.memory_space<vmem>>, vector<8x128xf32>
    %cst_48 = arith.constant dense<0.000000e+00> : vector<8x128xf32>
    %130 = tpu.matmul %98, %13, %cst_48 {dimension_numbers = #tpu.dot_dimension_numbers<[1], [0], [0], [1], [0, 0, 1, 1], [], []>} : vector<8x32xf32>, vector<32x128xf32>, vector<8x128xf32> -> vector<8x128xf32>
    %131 = arith.addf %129, %130 : vector<8x128xf32>
    %132 = arith.mulf %131, %23 : vector<8x128xf32>
    %133 = math.tanh %132 : vector<8x128xf32>
    %cst_49 = arith.constant 1.000000e+00 : f32
    %134 = vector.broadcast %cst_49 : f32 to vector<8x128xf32>
    %135 = arith.addf %134, %133 : vector<8x128xf32>
    %cst_50 = arith.constant 5.000000e-01 : f32
    %136 = vector.broadcast %cst_50 : f32 to vector<8x128xf32>
    %137 = arith.mulf %136, %135 : vector<8x128xf32>
    %138 = arith.select %20, %133, %137 : vector<8x128xi1>, vector<8x128xf32>
    %139 = vector.extract_strided_slice %138 {offsets = [0, 0], sizes = [8, 32], strides = [1, 1]} : vector<8x128xf32> to vector<8x32xf32>
    %140 = vector.extract_strided_slice %138 {offsets = [0, 32], sizes = [8, 32], strides = [1, 1]} : vector<8x128xf32> to vector<8x32xf32>
    %141 = vector.extract_strided_slice %138 {offsets = [0, 64], sizes = [8, 32], strides = [1, 1]} : vector<8x128xf32> to vector<8x32xf32>
    %142 = vector.extract_strided_slice %138 {offsets = [0, 96], sizes = [8, 32], strides = [1, 1]} : vector<8x128xf32> to vector<8x32xf32>
    %143 = arith.mulf %140, %96 : vector<8x32xf32>
    %144 = arith.mulf %139, %141 : vector<8x32xf32>
    %145 = arith.addf %143, %144 : vector<8x32xf32>
    %146 = math.tanh %145 : vector<8x32xf32>
    %147 = arith.mulf %142, %146 : vector<8x32xf32>
    %148 = arith.index_cast %127 : i32 to index
    %c0_51 = arith.constant 0 : index
    %149 = vector.load %arg10[%148, %c0_51] : memref<64x128xf32, #tpu.memory_space<vmem>>, vector<8x128xf32>
    %cst_52 = arith.constant dense<0.000000e+00> : vector<8x128xf32>
    %150 = tpu.matmul %118, %14, %cst_52 {dimension_numbers = #tpu.dot_dimension_numbers<[1], [0], [0], [1], [0, 0, 1, 1], [], []>} : vector<8x32xf32>, vector<32x128xf32>, vector<8x128xf32> -> vector<8x128xf32>
    %151 = arith.addf %149, %150 : vector<8x128xf32>
    %152 = arith.mulf %151, %23 : vector<8x128xf32>
    %153 = math.tanh %152 : vector<8x128xf32>
    %cst_53 = arith.constant 1.000000e+00 : f32
    %154 = vector.broadcast %cst_53 : f32 to vector<8x128xf32>
    %155 = arith.addf %154, %153 : vector<8x128xf32>
    %cst_54 = arith.constant 5.000000e-01 : f32
    %156 = vector.broadcast %cst_54 : f32 to vector<8x128xf32>
    %157 = arith.mulf %156, %155 : vector<8x128xf32>
    %158 = arith.select %20, %153, %157 : vector<8x128xi1>, vector<8x128xf32>
    %159 = vector.extract_strided_slice %158 {offsets = [0, 0], sizes = [8, 32], strides = [1, 1]} : vector<8x128xf32> to vector<8x32xf32>
    %160 = vector.extract_strided_slice %158 {offsets = [0, 32], sizes = [8, 32], strides = [1, 1]} : vector<8x128xf32> to vector<8x32xf32>
    %161 = vector.extract_strided_slice %158 {offsets = [0, 64], sizes = [8, 32], strides = [1, 1]} : vector<8x128xf32> to vector<8x32xf32>
    %162 = vector.extract_strided_slice %158 {offsets = [0, 96], sizes = [8, 32], strides = [1, 1]} : vector<8x128xf32> to vector<8x32xf32>
    %163 = arith.mulf %160, %116 : vector<8x32xf32>
    %164 = arith.mulf %159, %161 : vector<8x32xf32>
    %165 = arith.addf %163, %164 : vector<8x32xf32>
    %166 = math.tanh %165 : vector<8x32xf32>
    %167 = arith.mulf %162, %166 : vector<8x32xf32>
    %168 = arith.index_cast %124 : i32 to index
    %c0_55 = arith.constant 0 : index
    %169 = vector.load %arg8[%168, %c0_55] : memref<64x64xf32, #tpu.memory_space<vmem>>, vector<8x32xf32>
    tpu.vector_store %arg8[%168, %c0_55], %147 {strides = array<i32>} : memref<64x64xf32, #tpu.memory_space<vmem>>, vector<8x32xf32>,
    %170 = arith.index_cast %127 : i32 to index
    %c32_56 = arith.constant 32 : index
    %171 = vector.load %arg8[%170, %c32_56] : memref<64x64xf32, #tpu.memory_space<vmem>>, vector<8x32xf32>
    tpu.vector_store %arg8[%170, %c32_56], %167 {strides = array<i32>} : memref<64x64xf32, #tpu.memory_space<vmem>>, vector<8x32xf32>,
    %c3_i32 = arith.constant 3 : i32
    %c8_i32_57 = arith.constant 8 : i32
    %172 = arith.muli %c3_i32, %c8_i32_57 : i32
    %173 = tpu.assume_multiple %172, 8 : i32
    %c7_i32_58 = arith.constant 7 : i32
    %174 = arith.subi %c7_i32_58, %c3_i32 : i32
    %c8_i32_59 = arith.constant 8 : i32
    %175 = arith.muli %174, %c8_i32_59 : i32
    %176 = tpu.assume_multiple %175, 8 : i32
    %177 = arith.index_cast %173 : i32 to index
    %c0_60 = arith.constant 0 : index
    %178 = vector.load %arg9[%177, %c0_60] : memref<64x128xf32, #tpu.memory_space<vmem>>, vector<8x128xf32>
    %cst_61 = arith.constant dense<0.000000e+00> : vector<8x128xf32>
    %179 = tpu.matmul %147, %13, %cst_61 {dimension_numbers = #tpu.dot_dimension_numbers<[1], [0], [0], [1], [0, 0, 1, 1], [], []>} : vector<8x32xf32>, vector<32x128xf32>, vector<8x128xf32> -> vector<8x128xf32>
    %180 = arith.addf %178, %179 : vector<8x128xf32>
    %181 = arith.mulf %180, %23 : vector<8x128xf32>
    %182 = math.tanh %181 : vector<8x128xf32>
    %cst_62 = arith.constant 1.000000e+00 : f32
    %183 = vector.broadcast %cst_62 : f32 to vector<8x128xf32>
    %184 = arith.addf %183, %182 : vector<8x128xf32>
    %cst_63 = arith.constant 5.000000e-01 : f32
    %185 = vector.broadcast %cst_63 : f32 to vector<8x128xf32>
    %186 = arith.mulf %185, %184 : vector<8x128xf32>
    %187 = arith.select %20, %182, %186 : vector<8x128xi1>, vector<8x128xf32>
    %188 = vector.extract_strided_slice %187 {offsets = [0, 0], sizes = [8, 32], strides = [1, 1]} : vector<8x128xf32> to vector<8x32xf32>
    %189 = vector.extract_strided_slice %187 {offsets = [0, 32], sizes = [8, 32], strides = [1, 1]} : vector<8x128xf32> to vector<8x32xf32>
    %190 = vector.extract_strided_slice %187 {offsets = [0, 64], sizes = [8, 32], strides = [1, 1]} : vector<8x128xf32> to vector<8x32xf32>
    %191 = vector.extract_strided_slice %187 {offsets = [0, 96], sizes = [8, 32], strides = [1, 1]} : vector<8x128xf32> to vector<8x32xf32>
    %192 = arith.mulf %189, %145 : vector<8x32xf32>
    %193 = arith.mulf %188, %190 : vector<8x32xf32>
    %194 = arith.addf %192, %193 : vector<8x32xf32>
    %195 = math.tanh %194 : vector<8x32xf32>
    %196 = arith.mulf %191, %195 : vector<8x32xf32>
    %197 = arith.index_cast %176 : i32 to index
    %c0_64 = arith.constant 0 : index
    %198 = vector.load %arg10[%197, %c0_64] : memref<64x128xf32, #tpu.memory_space<vmem>>, vector<8x128xf32>
    %cst_65 = arith.constant dense<0.000000e+00> : vector<8x128xf32>
    %199 = tpu.matmul %167, %14, %cst_65 {dimension_numbers = #tpu.dot_dimension_numbers<[1], [0], [0], [1], [0, 0, 1, 1], [], []>} : vector<8x32xf32>, vector<32x128xf32>, vector<8x128xf32> -> vector<8x128xf32>
    %200 = arith.addf %198, %199 : vector<8x128xf32>
    %201 = arith.mulf %200, %23 : vector<8x128xf32>
    %202 = math.tanh %201 : vector<8x128xf32>
    %cst_66 = arith.constant 1.000000e+00 : f32
    %203 = vector.broadcast %cst_66 : f32 to vector<8x128xf32>
    %204 = arith.addf %203, %202 : vector<8x128xf32>
    %cst_67 = arith.constant 5.000000e-01 : f32
    %205 = vector.broadcast %cst_67 : f32 to vector<8x128xf32>
    %206 = arith.mulf %205, %204 : vector<8x128xf32>
    %207 = arith.select %20, %202, %206 : vector<8x128xi1>, vector<8x128xf32>
    %208 = vector.extract_strided_slice %207 {offsets = [0, 0], sizes = [8, 32], strides = [1, 1]} : vector<8x128xf32> to vector<8x32xf32>
    %209 = vector.extract_strided_slice %207 {offsets = [0, 32], sizes = [8, 32], strides = [1, 1]} : vector<8x128xf32> to vector<8x32xf32>
    %210 = vector.extract_strided_slice %207 {offsets = [0, 64], sizes = [8, 32], strides = [1, 1]} : vector<8x128xf32> to vector<8x32xf32>
    %211 = vector.extract_strided_slice %207 {offsets = [0, 96], sizes = [8, 32], strides = [1, 1]} : vector<8x128xf32> to vector<8x32xf32>
    %212 = arith.mulf %209, %165 : vector<8x32xf32>
    %213 = arith.mulf %208, %210 : vector<8x32xf32>
    %214 = arith.addf %212, %213 : vector<8x32xf32>
    %215 = math.tanh %214 : vector<8x32xf32>
    %216 = arith.mulf %211, %215 : vector<8x32xf32>
    %217 = arith.index_cast %173 : i32 to index
    %c0_68 = arith.constant 0 : index
    %218 = vector.load %arg8[%217, %c0_68] : memref<64x64xf32, #tpu.memory_space<vmem>>, vector<8x32xf32>
    tpu.vector_store %arg8[%217, %c0_68], %196 {strides = array<i32>} : memref<64x64xf32, #tpu.memory_space<vmem>>, vector<8x32xf32>,
    %219 = arith.index_cast %176 : i32 to index
    %c32_69 = arith.constant 32 : index
    %220 = vector.load %arg8[%219, %c32_69] : memref<64x64xf32, #tpu.memory_space<vmem>>, vector<8x32xf32>
    tpu.vector_store %arg8[%219, %c32_69], %216 {strides = array<i32>} : memref<64x64xf32, #tpu.memory_space<vmem>>, vector<8x32xf32>,
    %c4_i32 = arith.constant 4 : i32
    %c8_i32_70 = arith.constant 8 : i32
    %221 = arith.muli %c4_i32, %c8_i32_70 : i32
    %222 = tpu.assume_multiple %221, 8 : i32
    %c7_i32_71 = arith.constant 7 : i32
    %223 = arith.subi %c7_i32_71, %c4_i32 : i32
    %c8_i32_72 = arith.constant 8 : i32
    %224 = arith.muli %223, %c8_i32_72 : i32
    %225 = tpu.assume_multiple %224, 8 : i32
    %226 = arith.index_cast %222 : i32 to index
    %c0_73 = arith.constant 0 : index
    %227 = vector.load %arg9[%226, %c0_73] : memref<64x128xf32, #tpu.memory_space<vmem>>, vector<8x128xf32>
    %cst_74 = arith.constant dense<0.000000e+00> : vector<8x128xf32>
    %228 = tpu.matmul %196, %13, %cst_74 {dimension_numbers = #tpu.dot_dimension_numbers<[1], [0], [0], [1], [0, 0, 1, 1], [], []>} : vector<8x32xf32>, vector<32x128xf32>, vector<8x128xf32> -> vector<8x128xf32>
    %229 = arith.addf %227, %228 : vector<8x128xf32>
    %230 = arith.mulf %229, %23 : vector<8x128xf32>
    %231 = math.tanh %230 : vector<8x128xf32>
    %cst_75 = arith.constant 1.000000e+00 : f32
    %232 = vector.broadcast %cst_75 : f32 to vector<8x128xf32>
    %233 = arith.addf %232, %231 : vector<8x128xf32>
    %cst_76 = arith.constant 5.000000e-01 : f32
    %234 = vector.broadcast %cst_76 : f32 to vector<8x128xf32>
    %235 = arith.mulf %234, %233 : vector<8x128xf32>
    %236 = arith.select %20, %231, %235 : vector<8x128xi1>, vector<8x128xf32>
    %237 = vector.extract_strided_slice %236 {offsets = [0, 0], sizes = [8, 32], strides = [1, 1]} : vector<8x128xf32> to vector<8x32xf32>
    %238 = vector.extract_strided_slice %236 {offsets = [0, 32], sizes = [8, 32], strides = [1, 1]} : vector<8x128xf32> to vector<8x32xf32>
    %239 = vector.extract_strided_slice %236 {offsets = [0, 64], sizes = [8, 32], strides = [1, 1]} : vector<8x128xf32> to vector<8x32xf32>
    %240 = vector.extract_strided_slice %236 {offsets = [0, 96], sizes = [8, 32], strides = [1, 1]} : vector<8x128xf32> to vector<8x32xf32>
    %241 = arith.mulf %238, %194 : vector<8x32xf32>
    %242 = arith.mulf %237, %239 : vector<8x32xf32>
    %243 = arith.addf %241, %242 : vector<8x32xf32>
    %244 = math.tanh %243 : vector<8x32xf32>
    %245 = arith.mulf %240, %244 : vector<8x32xf32>
    %246 = arith.index_cast %225 : i32 to index
    %c0_77 = arith.constant 0 : index
    %247 = vector.load %arg10[%246, %c0_77] : memref<64x128xf32, #tpu.memory_space<vmem>>, vector<8x128xf32>
    %cst_78 = arith.constant dense<0.000000e+00> : vector<8x128xf32>
    %248 = tpu.matmul %216, %14, %cst_78 {dimension_numbers = #tpu.dot_dimension_numbers<[1], [0], [0], [1], [0, 0, 1, 1], [], []>} : vector<8x32xf32>, vector<32x128xf32>, vector<8x128xf32> -> vector<8x128xf32>
    %249 = arith.addf %247, %248 : vector<8x128xf32>
    %250 = arith.mulf %249, %23 : vector<8x128xf32>
    %251 = math.tanh %250 : vector<8x128xf32>
    %cst_79 = arith.constant 1.000000e+00 : f32
    %252 = vector.broadcast %cst_79 : f32 to vector<8x128xf32>
    %253 = arith.addf %252, %251 : vector<8x128xf32>
    %cst_80 = arith.constant 5.000000e-01 : f32
    %254 = vector.broadcast %cst_80 : f32 to vector<8x128xf32>
    %255 = arith.mulf %254, %253 : vector<8x128xf32>
    %256 = arith.select %20, %251, %255 : vector<8x128xi1>, vector<8x128xf32>
    %257 = vector.extract_strided_slice %256 {offsets = [0, 0], sizes = [8, 32], strides = [1, 1]} : vector<8x128xf32> to vector<8x32xf32>
    %258 = vector.extract_strided_slice %256 {offsets = [0, 32], sizes = [8, 32], strides = [1, 1]} : vector<8x128xf32> to vector<8x32xf32>
    %259 = vector.extract_strided_slice %256 {offsets = [0, 64], sizes = [8, 32], strides = [1, 1]} : vector<8x128xf32> to vector<8x32xf32>
    %260 = vector.extract_strided_slice %256 {offsets = [0, 96], sizes = [8, 32], strides = [1, 1]} : vector<8x128xf32> to vector<8x32xf32>
    %261 = arith.mulf %258, %214 : vector<8x32xf32>
    %262 = arith.mulf %257, %259 : vector<8x32xf32>
    %263 = arith.addf %261, %262 : vector<8x32xf32>
    %264 = math.tanh %263 : vector<8x32xf32>
    %265 = arith.mulf %260, %264 : vector<8x32xf32>
    %266 = arith.index_cast %222 : i32 to index
    %c0_81 = arith.constant 0 : index
    %267 = vector.load %arg8[%266, %c0_81] : memref<64x64xf32, #tpu.memory_space<vmem>>, vector<8x32xf32>
    tpu.vector_store %arg8[%266, %c0_81], %245 {strides = array<i32>} : memref<64x64xf32, #tpu.memory_space<vmem>>, vector<8x32xf32>,
    %268 = arith.index_cast %225 : i32 to index
    %c32_82 = arith.constant 32 : index
    %269 = vector.load %arg8[%268, %c32_82] : memref<64x64xf32, #tpu.memory_space<vmem>>, vector<8x32xf32>
    tpu.vector_store %arg8[%268, %c32_82], %265 {strides = array<i32>} : memref<64x64xf32, #tpu.memory_space<vmem>>, vector<8x32xf32>,
    %c5_i32 = arith.constant 5 : i32
    %c8_i32_83 = arith.constant 8 : i32
    %270 = arith.muli %c5_i32, %c8_i32_83 : i32
    %271 = tpu.assume_multiple %270, 8 : i32
    %c7_i32_84 = arith.constant 7 : i32
    %272 = arith.subi %c7_i32_84, %c5_i32 : i32
    %c8_i32_85 = arith.constant 8 : i32
    %273 = arith.muli %272, %c8_i32_85 : i32
    %274 = tpu.assume_multiple %273, 8 : i32
    %275 = arith.index_cast %271 : i32 to index
    %c0_86 = arith.constant 0 : index
    %276 = vector.load %arg9[%275, %c0_86] : memref<64x128xf32, #tpu.memory_space<vmem>>, vector<8x128xf32>
    %cst_87 = arith.constant dense<0.000000e+00> : vector<8x128xf32>
    %277 = tpu.matmul %245, %13, %cst_87 {dimension_numbers = #tpu.dot_dimension_numbers<[1], [0], [0], [1], [0, 0, 1, 1], [], []>} : vector<8x32xf32>, vector<32x128xf32>, vector<8x128xf32> -> vector<8x128xf32>
    %278 = arith.addf %276, %277 : vector<8x128xf32>
    %279 = arith.mulf %278, %23 : vector<8x128xf32>
    %280 = math.tanh %279 : vector<8x128xf32>
    %cst_88 = arith.constant 1.000000e+00 : f32
    %281 = vector.broadcast %cst_88 : f32 to vector<8x128xf32>
    %282 = arith.addf %281, %280 : vector<8x128xf32>
    %cst_89 = arith.constant 5.000000e-01 : f32
    %283 = vector.broadcast %cst_89 : f32 to vector<8x128xf32>
    %284 = arith.mulf %283, %282 : vector<8x128xf32>
    %285 = arith.select %20, %280, %284 : vector<8x128xi1>, vector<8x128xf32>
    %286 = vector.extract_strided_slice %285 {offsets = [0, 0], sizes = [8, 32], strides = [1, 1]} : vector<8x128xf32> to vector<8x32xf32>
    %287 = vector.extract_strided_slice %285 {offsets = [0, 32], sizes = [8, 32], strides = [1, 1]} : vector<8x128xf32> to vector<8x32xf32>
    %288 = vector.extract_strided_slice %285 {offsets = [0, 64], sizes = [8, 32], strides = [1, 1]} : vector<8x128xf32> to vector<8x32xf32>
    %289 = vector.extract_strided_slice %285 {offsets = [0, 96], sizes = [8, 32], strides = [1, 1]} : vector<8x128xf32> to vector<8x32xf32>
    %290 = arith.mulf %287, %243 : vector<8x32xf32>
    %291 = arith.mulf %286, %288 : vector<8x32xf32>
    %292 = arith.addf %290, %291 : vector<8x32xf32>
    %293 = math.tanh %292 : vector<8x32xf32>
    %294 = arith.mulf %289, %293 : vector<8x32xf32>
    %295 = arith.index_cast %274 : i32 to index
    %c0_90 = arith.constant 0 : index
    %296 = vector.load %arg10[%295, %c0_90] : memref<64x128xf32, #tpu.memory_space<vmem>>, vector<8x128xf32>
    %cst_91 = arith.constant dense<0.000000e+00> : vector<8x128xf32>
    %297 = tpu.matmul %265, %14, %cst_91 {dimension_numbers = #tpu.dot_dimension_numbers<[1], [0], [0], [1], [0, 0, 1, 1], [], []>} : vector<8x32xf32>, vector<32x128xf32>, vector<8x128xf32> -> vector<8x128xf32>
    %298 = arith.addf %296, %297 : vector<8x128xf32>
    %299 = arith.mulf %298, %23 : vector<8x128xf32>
    %300 = math.tanh %299 : vector<8x128xf32>
    %cst_92 = arith.constant 1.000000e+00 : f32
    %301 = vector.broadcast %cst_92 : f32 to vector<8x128xf32>
    %302 = arith.addf %301, %300 : vector<8x128xf32>
    %cst_93 = arith.constant 5.000000e-01 : f32
    %303 = vector.broadcast %cst_93 : f32 to vector<8x128xf32>
    %304 = arith.mulf %303, %302 : vector<8x128xf32>
    %305 = arith.select %20, %300, %304 : vector<8x128xi1>, vector<8x128xf32>
    %306 = vector.extract_strided_slice %305 {offsets = [0, 0], sizes = [8, 32], strides = [1, 1]} : vector<8x128xf32> to vector<8x32xf32>
    %307 = vector.extract_strided_slice %305 {offsets = [0, 32], sizes = [8, 32], strides = [1, 1]} : vector<8x128xf32> to vector<8x32xf32>
    %308 = vector.extract_strided_slice %305 {offsets = [0, 64], sizes = [8, 32], strides = [1, 1]} : vector<8x128xf32> to vector<8x32xf32>
    %309 = vector.extract_strided_slice %305 {offsets = [0, 96], sizes = [8, 32], strides = [1, 1]} : vector<8x128xf32> to vector<8x32xf32>
    %310 = arith.mulf %307, %263 : vector<8x32xf32>
    %311 = arith.mulf %306, %308 : vector<8x32xf32>
    %312 = arith.addf %310, %311 : vector<8x32xf32>
    %313 = math.tanh %312 : vector<8x32xf32>
    %314 = arith.mulf %309, %313 : vector<8x32xf32>
    %315 = arith.index_cast %271 : i32 to index
    %c0_94 = arith.constant 0 : index
    %316 = vector.load %arg8[%315, %c0_94] : memref<64x64xf32, #tpu.memory_space<vmem>>, vector<8x32xf32>
    tpu.vector_store %arg8[%315, %c0_94], %294 {strides = array<i32>} : memref<64x64xf32, #tpu.memory_space<vmem>>, vector<8x32xf32>,
    %317 = arith.index_cast %274 : i32 to index
    %c32_95 = arith.constant 32 : index
    %318 = vector.load %arg8[%317, %c32_95] : memref<64x64xf32, #tpu.memory_space<vmem>>, vector<8x32xf32>
    tpu.vector_store %arg8[%317, %c32_95], %314 {strides = array<i32>} : memref<64x64xf32, #tpu.memory_space<vmem>>, vector<8x32xf32>,
    %c6_i32 = arith.constant 6 : i32
    %c8_i32_96 = arith.constant 8 : i32
    %319 = arith.muli %c6_i32, %c8_i32_96 : i32
    %320 = tpu.assume_multiple %319, 8 : i32
    %c7_i32_97 = arith.constant 7 : i32
    %321 = arith.subi %c7_i32_97, %c6_i32 : i32
    %c8_i32_98 = arith.constant 8 : i32
    %322 = arith.muli %321, %c8_i32_98 : i32
    %323 = tpu.assume_multiple %322, 8 : i32
    %324 = arith.index_cast %320 : i32 to index
    %c0_99 = arith.constant 0 : index
    %325 = vector.load %arg9[%324, %c0_99] : memref<64x128xf32, #tpu.memory_space<vmem>>, vector<8x128xf32>
    %cst_100 = arith.constant dense<0.000000e+00> : vector<8x128xf32>
    %326 = tpu.matmul %294, %13, %cst_100 {dimension_numbers = #tpu.dot_dimension_numbers<[1], [0], [0], [1], [0, 0, 1, 1], [], []>} : vector<8x32xf32>, vector<32x128xf32>, vector<8x128xf32> -> vector<8x128xf32>
    %327 = arith.addf %325, %326 : vector<8x128xf32>
    %328 = arith.mulf %327, %23 : vector<8x128xf32>
    %329 = math.tanh %328 : vector<8x128xf32>
    %cst_101 = arith.constant 1.000000e+00 : f32
    %330 = vector.broadcast %cst_101 : f32 to vector<8x128xf32>
    %331 = arith.addf %330, %329 : vector<8x128xf32>
    %cst_102 = arith.constant 5.000000e-01 : f32
    %332 = vector.broadcast %cst_102 : f32 to vector<8x128xf32>
    %333 = arith.mulf %332, %331 : vector<8x128xf32>
    %334 = arith.select %20, %329, %333 : vector<8x128xi1>, vector<8x128xf32>
    %335 = vector.extract_strided_slice %334 {offsets = [0, 0], sizes = [8, 32], strides = [1, 1]} : vector<8x128xf32> to vector<8x32xf32>
    %336 = vector.extract_strided_slice %334 {offsets = [0, 32], sizes = [8, 32], strides = [1, 1]} : vector<8x128xf32> to vector<8x32xf32>
    %337 = vector.extract_strided_slice %334 {offsets = [0, 64], sizes = [8, 32], strides = [1, 1]} : vector<8x128xf32> to vector<8x32xf32>
    %338 = vector.extract_strided_slice %334 {offsets = [0, 96], sizes = [8, 32], strides = [1, 1]} : vector<8x128xf32> to vector<8x32xf32>
    %339 = arith.mulf %336, %292 : vector<8x32xf32>
    %340 = arith.mulf %335, %337 : vector<8x32xf32>
    %341 = arith.addf %339, %340 : vector<8x32xf32>
    %342 = math.tanh %341 : vector<8x32xf32>
    %343 = arith.mulf %338, %342 : vector<8x32xf32>
    %344 = arith.index_cast %323 : i32 to index
    %c0_103 = arith.constant 0 : index
    %345 = vector.load %arg10[%344, %c0_103] : memref<64x128xf32, #tpu.memory_space<vmem>>, vector<8x128xf32>
    %cst_104 = arith.constant dense<0.000000e+00> : vector<8x128xf32>
    %346 = tpu.matmul %314, %14, %cst_104 {dimension_numbers = #tpu.dot_dimension_numbers<[1], [0], [0], [1], [0, 0, 1, 1], [], []>} : vector<8x32xf32>, vector<32x128xf32>, vector<8x128xf32> -> vector<8x128xf32>
    %347 = arith.addf %345, %346 : vector<8x128xf32>
    %348 = arith.mulf %347, %23 : vector<8x128xf32>
    %349 = math.tanh %348 : vector<8x128xf32>
    %cst_105 = arith.constant 1.000000e+00 : f32
    %350 = vector.broadcast %cst_105 : f32 to vector<8x128xf32>
    %351 = arith.addf %350, %349 : vector<8x128xf32>
    %cst_106 = arith.constant 5.000000e-01 : f32
    %352 = vector.broadcast %cst_106 : f32 to vector<8x128xf32>
    %353 = arith.mulf %352, %351 : vector<8x128xf32>
    %354 = arith.select %20, %349, %353 : vector<8x128xi1>, vector<8x128xf32>
    %355 = vector.extract_strided_slice %354 {offsets = [0, 0], sizes = [8, 32], strides = [1, 1]} : vector<8x128xf32> to vector<8x32xf32>
    %356 = vector.extract_strided_slice %354 {offsets = [0, 32], sizes = [8, 32], strides = [1, 1]} : vector<8x128xf32> to vector<8x32xf32>
    %357 = vector.extract_strided_slice %354 {offsets = [0, 64], sizes = [8, 32], strides = [1, 1]} : vector<8x128xf32> to vector<8x32xf32>
    %358 = vector.extract_strided_slice %354 {offsets = [0, 96], sizes = [8, 32], strides = [1, 1]} : vector<8x128xf32> to vector<8x32xf32>
    %359 = arith.mulf %356, %312 : vector<8x32xf32>
    %360 = arith.mulf %355, %357 : vector<8x32xf32>
    %361 = arith.addf %359, %360 : vector<8x32xf32>
    %362 = math.tanh %361 : vector<8x32xf32>
    %363 = arith.mulf %358, %362 : vector<8x32xf32>
    %364 = arith.index_cast %320 : i32 to index
    %c0_107 = arith.constant 0 : index
    %365 = vector.load %arg8[%364, %c0_107] : memref<64x64xf32, #tpu.memory_space<vmem>>, vector<8x32xf32>
    tpu.vector_store %arg8[%364, %c0_107], %343 {strides = array<i32>} : memref<64x64xf32, #tpu.memory_space<vmem>>, vector<8x32xf32>,
    %366 = arith.index_cast %323 : i32 to index
    %c32_108 = arith.constant 32 : index
    %367 = vector.load %arg8[%366, %c32_108] : memref<64x64xf32, #tpu.memory_space<vmem>>, vector<8x32xf32>
    tpu.vector_store %arg8[%366, %c32_108], %363 {strides = array<i32>} : memref<64x64xf32, #tpu.memory_space<vmem>>, vector<8x32xf32>,
    %c7_i32_109 = arith.constant 7 : i32
    %c8_i32_110 = arith.constant 8 : i32
    %368 = arith.muli %c7_i32_109, %c8_i32_110 : i32
    %369 = tpu.assume_multiple %368, 8 : i32
    %c7_i32_111 = arith.constant 7 : i32
    %370 = arith.subi %c7_i32_111, %c7_i32_109 : i32
    %c8_i32_112 = arith.constant 8 : i32
    %371 = arith.muli %370, %c8_i32_112 : i32
    %372 = tpu.assume_multiple %371, 8 : i32
    %373 = arith.index_cast %369 : i32 to index
    %c0_113 = arith.constant 0 : index
    %374 = vector.load %arg9[%373, %c0_113] : memref<64x128xf32, #tpu.memory_space<vmem>>, vector<8x128xf32>
    %cst_114 = arith.constant dense<0.000000e+00> : vector<8x128xf32>
    %375 = tpu.matmul %343, %13, %cst_114 {dimension_numbers = #tpu.dot_dimension_numbers<[1], [0], [0], [1], [0, 0, 1, 1], [], []>} : vector<8x32xf32>, vector<32x128xf32>, vector<8x128xf32> -> vector<8x128xf32>
    %376 = arith.addf %374, %375 : vector<8x128xf32>
    %377 = arith.mulf %376, %23 : vector<8x128xf32>
    %378 = math.tanh %377 : vector<8x128xf32>
    %cst_115 = arith.constant 1.000000e+00 : f32
    %379 = vector.broadcast %cst_115 : f32 to vector<8x128xf32>
    %380 = arith.addf %379, %378 : vector<8x128xf32>
    %cst_116 = arith.constant 5.000000e-01 : f32
    %381 = vector.broadcast %cst_116 : f32 to vector<8x128xf32>
    %382 = arith.mulf %381, %380 : vector<8x128xf32>
    %383 = arith.select %20, %378, %382 : vector<8x128xi1>, vector<8x128xf32>
    %384 = vector.extract_strided_slice %383 {offsets = [0, 0], sizes = [8, 32], strides = [1, 1]} : vector<8x128xf32> to vector<8x32xf32>
    %385 = vector.extract_strided_slice %383 {offsets = [0, 32], sizes = [8, 32], strides = [1, 1]} : vector<8x128xf32> to vector<8x32xf32>
    %386 = vector.extract_strided_slice %383 {offsets = [0, 64], sizes = [8, 32], strides = [1, 1]} : vector<8x128xf32> to vector<8x32xf32>
    %387 = vector.extract_strided_slice %383 {offsets = [0, 96], sizes = [8, 32], strides = [1, 1]} : vector<8x128xf32> to vector<8x32xf32>
    %388 = arith.mulf %385, %341 : vector<8x32xf32>
    %389 = arith.mulf %384, %386 : vector<8x32xf32>
    %390 = arith.addf %388, %389 : vector<8x32xf32>
    %391 = math.tanh %390 : vector<8x32xf32>
    %392 = arith.mulf %387, %391 : vector<8x32xf32>
    %393 = arith.index_cast %372 : i32 to index
    %c0_117 = arith.constant 0 : index
    %394 = vector.load %arg10[%393, %c0_117] : memref<64x128xf32, #tpu.memory_space<vmem>>, vector<8x128xf32>
    %cst_118 = arith.constant dense<0.000000e+00> : vector<8x128xf32>
    %395 = tpu.matmul %363, %14, %cst_118 {dimension_numbers = #tpu.dot_dimension_numbers<[1], [0], [0], [1], [0, 0, 1, 1], [], []>} : vector<8x32xf32>, vector<32x128xf32>, vector<8x128xf32> -> vector<8x128xf32>
    %396 = arith.addf %394, %395 : vector<8x128xf32>
    %397 = arith.mulf %396, %23 : vector<8x128xf32>
    %398 = math.tanh %397 : vector<8x128xf32>
    %cst_119 = arith.constant 1.000000e+00 : f32
    %399 = vector.broadcast %cst_119 : f32 to vector<8x128xf32>
    %400 = arith.addf %399, %398 : vector<8x128xf32>
    %cst_120 = arith.constant 5.000000e-01 : f32
    %401 = vector.broadcast %cst_120 : f32 to vector<8x128xf32>
    %402 = arith.mulf %401, %400 : vector<8x128xf32>
    %403 = arith.select %20, %398, %402 : vector<8x128xi1>, vector<8x128xf32>
    %404 = vector.extract_strided_slice %403 {offsets = [0, 0], sizes = [8, 32], strides = [1, 1]} : vector<8x128xf32> to vector<8x32xf32>
    %405 = vector.extract_strided_slice %403 {offsets = [0, 32], sizes = [8, 32], strides = [1, 1]} : vector<8x128xf32> to vector<8x32xf32>
    %406 = vector.extract_strided_slice %403 {offsets = [0, 64], sizes = [8, 32], strides = [1, 1]} : vector<8x128xf32> to vector<8x32xf32>
    %407 = vector.extract_strided_slice %403 {offsets = [0, 96], sizes = [8, 32], strides = [1, 1]} : vector<8x128xf32> to vector<8x32xf32>
    %408 = arith.mulf %405, %361 : vector<8x32xf32>
    %409 = arith.mulf %404, %406 : vector<8x32xf32>
    %410 = arith.addf %408, %409 : vector<8x32xf32>
    %411 = math.tanh %410 : vector<8x32xf32>
    %412 = arith.mulf %407, %411 : vector<8x32xf32>
    %413 = arith.index_cast %369 : i32 to index
    %c0_121 = arith.constant 0 : index
    %414 = vector.load %arg8[%413, %c0_121] : memref<64x64xf32, #tpu.memory_space<vmem>>, vector<8x32xf32>
    tpu.vector_store %arg8[%413, %c0_121], %392 {strides = array<i32>} : memref<64x64xf32, #tpu.memory_space<vmem>>, vector<8x32xf32>,
    %415 = arith.index_cast %372 : i32 to index
    %c32_122 = arith.constant 32 : index
    %416 = vector.load %arg8[%415, %c32_122] : memref<64x64xf32, #tpu.memory_space<vmem>>, vector<8x32xf32>
    tpu.vector_store %arg8[%415, %c32_122], %412 {strides = array<i32>} : memref<64x64xf32, #tpu.memory_space<vmem>>, vector<8x32xf32>,
    %c8_i32_123 = arith.constant 8 : i32
    return
  }
  func.func @transform_0(%arg0: i32) -> (i32, i32) {
    %c0_i32 = arith.constant 0 : i32
    %c0_i32_0 = arith.constant 0 : i32
    %c0_i32_1 = arith.constant 0 : i32
    return %c0_i32, %c0_i32_0 : i32, i32
  }
  func.func @transform_1(%arg0: i32) -> (i32, i32) {
    %c0_i32 = arith.constant 0 : i32
    %c0_i32_0 = arith.constant 0 : i32
    %c0_i32_1 = arith.constant 0 : i32
    return %c0_i32, %c0_i32_0 : i32, i32
  }
  func.func @transform_2(%arg0: i32) -> (i32, i32) {
    %c0_i32 = arith.constant 0 : i32
    %c0_i32_0 = arith.constant 0 : i32
    %c0_i32_1 = arith.constant 0 : i32
    return %c0_i32, %c0_i32_0 : i32, i32
  }
  func.func @transform_3(%arg0: i32) -> (i32, i32) {
    %c0_i32 = arith.constant 0 : i32
    %c0_i32_0 = arith.constant 0 : i32
    %c0_i32_1 = arith.constant 0 : i32
    return %c0_i32, %c0_i32_0 : i32, i32
  }
  func.func @transform_4(%arg0: i32) -> (i32, i32) {
    %c0_i32 = arith.constant 0 : i32
    %c0_i32_0 = arith.constant 0 : i32
    %c0_i32_1 = arith.constant 0 : i32
    return %c0_i32, %c0_i32_0 : i32, i32
  }
  func.func @transform_5(%arg0: i32) -> (i32, i32) {
    %c0_i32 = arith.constant 0 : i32
    %c0_i32_0 = arith.constant 0 : i32
    %c0_i32_1 = arith.constant 0 : i32
    return %c0_i32, %c0_i32_0 : i32, i32
  }
  func.func @transform_6(%arg0: i32) -> (i32, i32) {
    %c0_i32 = arith.constant 0 : i32
    %c0_i32_0 = arith.constant 0 : i32
    %c0_i32_1 = arith.constant 0 : i32
    return %c0_i32, %c0_i32_0 : i32, i32
  }
  func.func @transform_7(%arg0: i32) -> (i32, i32) {
    %c0_i32 = arith.constant 0 : i32
    %c0_i32_0 = arith.constant 0 : i32
    %c0_i32_1 = arith.constant 0 : i32
    return %c0_i32, %c0_i32_0 : i32, i32
  }
}

</mosaic_0001>

<llo_original>
// kernel: tpu_custom_call.1
$region0: #{tpu_custom_call.1}
  #allocation0 [shape = 'u32[]', space=smem, size = 0x4, offset = 0x4, fixed_abs, tag = 'smem constant byte address 0x4 - core index']
  #allocation1 [shape = 'u32[72,128]{1,0:T(1,128)}', space=vmem, size = 0x9000, scoped, tag = 'internal scratch']
  #allocation2 [shape = 'f32[64,128]{1,0:T(8,128)}', space=vmem, size = 0x8000, scoped, tag = 'scratch operand']
  #allocation3 [shape = 'f32[64,128]{1,0:T(8,128)}', space=vmem, size = 0x8000, scoped, tag = 'scratch operand']
  %s0 = inlined_call_operand.vmem [shape: f32[64,16], index: 0, kind: input, shape index: {}]
  %s1 = inlined_call_operand.vmem [shape: f32[16,128], index: 1, kind: input, shape index: {}]
  %s2 = inlined_call_operand.hbm [shape: f32[16,128], index: 2, kind: input, shape index: {}]
  %s3 = inlined_call_operand.vmem [shape: f32[32,128], index: 3, kind: input, shape index: {}]
  %s4 = inlined_call_operand.vmem [shape: f32[32,128], index: 4, kind: input, shape index: {}]
  %s5 = inlined_call_operand.vmem [shape: f32[1,128], index: 5, kind: input, shape index: {}]
  %s6 = inlined_call_operand.vmem [shape: f32[1,128], index: 6, kind: input, shape index: {}]
  %s7 = inlined_call_operand.hbm [shape: f32[64,64], index: 7, kind: output, shape index: {}]
  %s8 = sld [smem:[#allocation0]]
  $region42: #{tpu_custom_call.1} parent=0
    _
  %s10 = ssub.s32 1, %s8
  %s11 = scalar_select 0, %s10, %s8
  $region1: #{tpu_custom_call.1} parent=0
    #allocation4 [shape = 'u8[8192]{0}', space=vmem, size = 0x2000, scoped, tag = 'input window, operand 2, single buffered']
    #allocation5 [shape = 's32[1]{0}', space=sflag, size = 0x4, scoped, tag = 'scoped memory for tpu_custom_call.1']
    #allocation6 [shape = 's32[1]{0}', space=sflag, size = 0x4, scoped, tag = 'scoped memory for tpu_custom_call.1']
    #allocation7 [shape = 'u8[32768]{0}', space=vmem, size = 0x8000, scoped, tag = 'output window, operand 0, single buffered']
    %12 = vsyncpa [#allocation5], 0
    %13 = vsyncpa [#allocation6], 0
    // Predicated region
    $region2: #{tpu_custom_call.1} parent=1 // pred_check
      _
    $region3: #{tpu_custom_call.1} parent=1 // pred_check_branch
      %15 = sbr.rel (0) target = $region5
    $region4: #{tpu_custom_call.1} parent=1 // pred_region
      _
    $region5: #{tpu_custom_call.1} parent=1 // pred_fallthru
      _
    // Predicated region
    $region6: #{tpu_custom_call.1} parent=1 // pred_check
      _
    $region7: #{tpu_custom_call.1} parent=1 // pred_check_branch
      %17 = sbr.rel (0) target = $region9
    $region8: #{tpu_custom_call.1} parent=1 // pred_region
      _
    $region9: #{tpu_custom_call.1} parent=1 // pred_fallthru
      _
    // Predicated region
    $region10: #{tpu_custom_call.1} parent=1 // pred_check
      _
    $region11: #{tpu_custom_call.1} parent=1 // pred_check_branch
      %19 = sbr.rel (0) target = $region13
    $region12: #{tpu_custom_call.1} parent=1 // pred_region
      %21 = vsyncadd [#allocation5], 0
      %s22 = sshll.u32 %s2, 4
      %s23 = int_to_ptr.hbm [resolvable:$true] %s22
      %s24 = sshll.u32 [#allocation4], 4
      %s25 = int_to_ptr.vmem [resolvable:$true] %s24
      %30 = dma.hbm_to_vmem [thread:$0]  %s23, 256, %s25, [#allocation5], 128, 128, 8
    $region13: #{tpu_custom_call.1} parent=1 // pred_fallthru
      _
    // Predicated region
    $region14: #{tpu_custom_call.1} parent=1 // pred_check
      _
    $region15: #{tpu_custom_call.1} parent=1 // pred_check_branch
      %32 = sbr.rel (0) target = $region17
    $region16: #{tpu_custom_call.1} parent=1 // pred_region
      _
    $region17: #{tpu_custom_call.1} parent=1 // pred_fallthru
      _
    // Predicated region
    $region18: #{tpu_custom_call.1} parent=1 // pred_check
      _
    $region19: #{tpu_custom_call.1} parent=1 // pred_check_branch
      %34 = sbr.rel (0) target = $region21
    $region20: #{tpu_custom_call.1} parent=1 // pred_region
      _
    $region21: #{tpu_custom_call.1} parent=1 // pred_fallthru
      _
    // Predicated region
    $region22: #{tpu_custom_call.1} parent=1 // pred_check
      _
    $region23: #{tpu_custom_call.1} parent=1 // pred_check_branch
      %36 = sbr.rel (0) target = $region25
    $region24: #{tpu_custom_call.1} parent=1 // pred_region
      _
    $region25: #{tpu_custom_call.1} parent=1 // pred_fallthru
      _
    // Predicated region
    $region26: #{tpu_custom_call.1} parent=1 // pred_check
      _
    $region27: #{tpu_custom_call.1} parent=1 // pred_check_branch
      %38 = sbr.rel (0) target = $region29
    $region28: #{tpu_custom_call.1} parent=1 // pred_region
      _
    $region29: #{tpu_custom_call.1} parent=1 // pred_fallthru
      _
    // Predicated region
    $region30: #{tpu_custom_call.1} parent=1 // pred_check
      _
    $region31: #{tpu_custom_call.1} parent=1 // pred_check_branch
      %40 = sbr.rel (0) target = $region33
    $region32: #{tpu_custom_call.1} parent=1 // pred_region
      %42 = dma.done [#allocation5], 256
    $region33: #{tpu_custom_call.1} parent=1 // pred_fallthru
      _
    %v43 = vld [vmem:[%s0] sm:$0xff]
    %v44 = vld [vmem:[%s0 + $0x8] sm:$0xff]
    %v45 = vld [vmem:[%s0 + $0x10] sm:$0xff]
    %v46 = vld [vmem:[%s0 + $0x18] sm:$0xff]
    %v47 = vld [vmem:[%s0 + $0x20] sm:$0xff]
    %v48 = vld [vmem:[%s0 + $0x28] sm:$0xff]
    %v49 = vld [vmem:[%s0 + $0x30] sm:$0xff]
    %v50 = vld [vmem:[%s0 + $0x38] sm:$0xff]
    %v51 = vld [vmem:[%s1] sm:$0xff]
    %v52 = vld [vmem:[%s1 + $0x8] sm:$0xff]
    %v53 = vld [vmem:[%s5] sm:$0x1]
    %v55 = vperm.slane %v53, 0
    %vm57 = vcmask 130048
    %v59 = vsel %vm57, %v43, 0
    %v62 = vsel %vm57, %v44, 0
    %v65 = vsel %vm57, %v45, 0
    %v68 = vsel %vm57, %v46, 0
    %v71 = vsel %vm57, %v47, 0
    %v74 = vsel %vm57, %v48, 0
    %v77 = vsel %vm57, %v49, 0
    %v80 = vsel %vm57, %v50, 0
    %82 = vmatpush.msra.mxu0 0.0
    %83 = vmatpush.msra.mxu0 0.0
    %84 = vmatpush.msra.mxu0 0.0
    %85 = vmatpush.msra.mxu0 0.0
    %86 = vmatpush.msra.mxu0 0.0
    %87 = vmatpush.msra.mxu0 0.0
    %88 = vmatpush.msra.mxu0 0.0
    %89 = vmatpush.msra.mxu0 0.0
    %90 = vmatpush.msra.mxu0 0.0
    %91 = vmatpush.msra.mxu0 0.0
    %92 = vmatpush.msra.mxu0 0.0
    %93 = vmatpush.msra.mxu0 0.0
    %94 = vmatpush.msra.mxu0 0.0
    %95 = vmatpush.msra.mxu0 0.0
    %96 = vmatpush.msra.mxu0 %v52
    %97 = vmatpush.msra.mxu0 %v51
    %98 = vmatmul.f32.gmra.mxu0 %v59
    %v99 = vpop.f32.mrf.mxu0
    %v100 = vadd.f32 %v55, %v99
    %101 = vmatmul.f32.gmra.mxu0 %v62
    %v102 = vpop.f32.mrf.mxu0
    %v103 = vadd.f32 %v55, %v102
    %104 = vmatmul.f32.gmra.mxu0 %v65
    %v105 = vpop.f32.mrf.mxu0
    %v106 = vadd.f32 %v55, %v105
    %107 = vmatmul.f32.gmra.mxu0 %v68
    %v108 = vpop.f32.mrf.mxu0
    %v109 = vadd.f32 %v55, %v108
    %110 = vmatmul.f32.gmra.mxu0 %v71
    %v111 = vpop.f32.mrf.mxu0
    %v112 = vadd.f32 %v55, %v111
    %113 = vmatmul.f32.gmra.mxu0 %v74
    %v114 = vpop.f32.mrf.mxu0
    %v115 = vadd.f32 %v55, %v114
    %116 = vmatmul.f32.gmra.mxu0 %v77
    %v117 = vpop.f32.mrf.mxu0
    %v118 = vadd.f32 %v55, %v117
    %119 = vmatmul.f32.gmra.mxu0 %v80
    %v120 = vpop.f32.mrf.mxu0
    %v121 = vadd.f32 %v55, %v120
    %122 = vdwg.mxu0
    %123 = vst [vmem:[#allocation2] sm:$0xff] %v100
    %124 = vst [vmem:[#allocation2 + $0x8] sm:$0xff] %v103
    %125 = vst [vmem:[#allocation2 + $0x10] sm:$0xff] %v106
    %126 = vst [vmem:[#allocation2 + $0x18] sm:$0xff] %v109
    %127 = vst [vmem:[#allocation2 + $0x20] sm:$0xff] %v112
    %128 = vst [vmem:[#allocation2 + $0x28] sm:$0xff] %v115
    %129 = vst [vmem:[#allocation2 + $0x30] sm:$0xff] %v118
    %130 = vst [vmem:[#allocation2 + $0x38] sm:$0xff] %v121
    %v131 = vld [vmem:[#allocation4] sm:$0xff]
    %v132 = vld [vmem:[#allocation4 + $0x8] sm:$0xff]
    %v133 = vld [vmem:[%s6] sm:$0x1]
    %v135 = vperm.slane %v133, 0
    %137 = vmatpush.msra.mxu0 0.0
    %138 = vmatpush.msra.mxu0 0.0
    %139 = vmatpush.msra.mxu0 0.0
    %140 = vmatpush.msra.mxu0 0.0
    %141 = vmatpush.msra.mxu0 0.0
    %142 = vmatpush.msra.mxu0 0.0
    %143 = vmatpush.msra.mxu0 0.0
    %144 = vmatpush.msra.mxu0 0.0
    %145 = vmatpush.msra.mxu0 0.0
    %146 = vmatpush.msra.mxu0 0.0
    %147 = vmatpush.msra.mxu0 0.0
    %148 = vmatpush.msra.mxu0 0.0
    %149 = vmatpush.msra.mxu0 0.0
    %150 = vmatpush.msra.mxu0 0.0
    %151 = vmatpush.msra.mxu0 %v132
    %152 = vmatpush.msra.mxu0 %v131
    %153 = vmatmul.f32.gmra.mxu0 %v59
    %v154 = vpop.f32.mrf.mxu0
    %v155 = vadd.f32 %v135, %v154
    %156 = vmatmul.f32.gmra.mxu0 %v62
    %v157 = vpop.f32.mrf.mxu0
    %v158 = vadd.f32 %v135, %v157
    %159 = vmatmul.f32.gmra.mxu0 %v65
    %v160 = vpop.f32.mrf.mxu0
    %v161 = vadd.f32 %v135, %v160
    %162 = vmatmul.f32.gmra.mxu0 %v68
    %v163 = vpop.f32.mrf.mxu0
    %v164 = vadd.f32 %v135, %v163
    %165 = vmatmul.f32.gmra.mxu0 %v71
    %v166 = vpop.f32.mrf.mxu0
    %v167 = vadd.f32 %v135, %v166
    %168 = vmatmul.f32.gmra.mxu0 %v74
    %v169 = vpop.f32.mrf.mxu0
    %v170 = vadd.f32 %v135, %v169
    %171 = vmatmul.f32.gmra.mxu0 %v77
    %v172 = vpop.f32.mrf.mxu0
    %v173 = vadd.f32 %v135, %v172
    %174 = vmatmul.f32.gmra.mxu0 %v80
    %v175 = vpop.f32.mrf.mxu0
    %v176 = vadd.f32 %v135, %v175
    %177 = vdwg.mxu0
    %178 = vst [vmem:[#allocation3] sm:$0xff] %v155
    %179 = vst [vmem:[#allocation3 + $0x8] sm:$0xff] %v158
    %180 = vst [vmem:[#allocation3 + $0x10] sm:$0xff] %v161
    %181 = vst [vmem:[#allocation3 + $0x18] sm:$0xff] %v164
    %182 = vst [vmem:[#allocation3 + $0x20] sm:$0xff] %v167
    %183 = vst [vmem:[#allocation3 + $0x28] sm:$0xff] %v170
    %184 = vst [vmem:[#allocation3 + $0x30] sm:$0xff] %v173
    %185 = vst [vmem:[#allocation3 + $0x38] sm:$0xff] %v176
    %v186 = vld [vmem:[%s3] sm:$0xff]
    %v187 = vld [vmem:[%s3 + $0x8] sm:$0xff]
    %v188 = vld [vmem:[%s3 + $0x10] sm:$0xff]
    %v189 = vld [vmem:[%s3 + $0x18] sm:$0xff]
    %v190 = vld [vmem:[%s4] sm:$0xff]
    %v191 = vld [vmem:[%s4 + $0x8] sm:$0xff]
    %v192 = vld [vmem:[%s4 + $0x10] sm:$0xff]
    %v193 = vld [vmem:[%s4 + $0x18] sm:$0xff]
    %v194 = vlaneseq
    %v195 = vand.u32 %v194, 127
    %vm196 = vcmp.ge.s32.totalorder %v195, 64
    %vm197 = vcmp.lt.s32.totalorder %v195, 96
    %vm198 = vmand %vm196, %vm197
    %v199 = vsel %vm198, 1.0, 0.5
    %v200 = vld [vmem:[#allocation2] sm:$0xff]
    %vm201 = vcmask 261120
    %v203 = vsel %vm201, 0.0, 0
    %205 = vmatpush.msra.mxu0 0.0
    %206 = vmatpush.msra.mxu0 0.0
    %207 = vmatpush.msra.mxu0 0.0
    %208 = vmatpush.msra.mxu0 0.0
    %209 = vmatpush.msra.mxu0 0.0
    %210 = vmatpush.msra.mxu0 0.0
    %211 = vmatpush.msra.mxu0 0.0
    %212 = vmatpush.msra.mxu0 0.0
    %213 = vmatpush.msra.mxu0 0.0
    %214 = vmatpush.msra.mxu0 0.0
    %215 = vmatpush.msra.mxu0 0.0
    %216 = vmatpush.msra.mxu0 0.0
    %217 = vmatpush.msra.mxu0 %v189
    %218 = vmatpush.msra.mxu0 %v188
    %219 = vmatpush.msra.mxu0 %v187
    %220 = vmatpush.msra.mxu0 %v186
    %221 = vmatmul.f32.gmra.mxu0 %v203
    %v222 = vpop.f32.mrf.mxu0
    %v223 = vadd.f32 0.0, %v222
    %224 = vdwg.mxu0
    %v225 = vadd.f32 %v200, %v223
    %v226 = vmul.f32 %v225, %v199
    %v227 = vtanh.pop %v226
    %v228 = vadd.f32 %v227, 1.0
    %v229 = vmul.f32 %v228, 0.5
    %v230 = vsel %vm198, %v227, %v229
    %v231 = vmul.f32 %v230, 0.0
    %233 = vrot.lane.b32.xlu0 %v230, 64
    %v234 = vpop.permute.xlu0 %233
    %v236 = vmul.f32 %v230, %v234
    %238 = vrot.lane.b32.xlu0 %v236, 32
    %v239 = vpop.permute.xlu0 %238
    %v241 = vadd.f32 %v231, %v239
    %v242 = vtanh.pop %v241
    %244 = vrot.lane.b32.xlu0 %v242, 64
    %v245 = vpop.permute.xlu0 %244
    %v247 = vmul.f32 %v230, %v245
    %s248 = scalar_lea.vmem [#allocation3], 56
    %v249 = vld [vmem:[%s248] sm:$0xff]
    %250 = vmatpush.msra.mxu0 0.0
    %251 = vmatpush.msra.mxu0 0.0
    %252 = vmatpush.msra.mxu0 0.0
    %253 = vmatpush.msra.mxu0 0.0
    %254 = vmatpush.msra.mxu0 0.0
    %255 = vmatpush.msra.mxu0 0.0
    %256 = vmatpush.msra.mxu0 0.0
    %257 = vmatpush.msra.mxu0 0.0
    %258 = vmatpush.msra.mxu0 0.0
    %259 = vmatpush.msra.mxu0 0.0
    %260 = vmatpush.msra.mxu0 0.0
    %261 = vmatpush.msra.mxu0 0.0
    %262 = vmatpush.msra.mxu0 %v193
    %263 = vmatpush.msra.mxu0 %v192
    %264 = vmatpush.msra.mxu0 %v191
    %265 = vmatpush.msra.mxu0 %v190
    %266 = vmatmul.f32.gmra.mxu0 %v203
    %v267 = vpop.f32.mrf.mxu0
    %v268 = vadd.f32 0.0, %v267
    %269 = vdwg.mxu0
    %v270 = vadd.f32 %v249, %v268
    %v271 = vmul.f32 %v270, %v199
    %v272 = vtanh.pop %v271
    %v273 = vadd.f32 %v272, 1.0
    %v274 = vmul.f32 %v273, 0.5
    %v275 = vsel %vm198, %v272, %v274
    %v276 = vmul.f32 %v275, 0.0
    %278 = vrot.lane.b32.xlu0 %v275, 64
    %v279 = vpop.permute.xlu0 %278
    %v281 = vmul.f32 %v275, %v279
    %283 = vrot.lane.b32.xlu0 %v281, 32
    %v284 = vpop.permute.xlu0 %283
    %v286 = vadd.f32 %v276, %v284
    %v287 = vtanh.pop %v286
    %289 = vrot.lane.b32.xlu0 %v287, 64
    %v290 = vpop.permute.xlu0 %289
    %v292 = vmul.f32 %v275, %v290
    %294 = vrot.lane.b32.xlu0 %v247, 32
    %v295 = vpop.permute.xlu0 %294
    %297 = vst.msk [vmem:[#allocation7] sm:$0xff] %vm201, %v295
    %299 = vrot.lane.b32.xlu0 %v292, 64
    %v300 = vpop.permute.xlu0 %299
    %s302 = scalar_lea.vmem [#allocation7], 56
    %vm303 = vcmask 523520
    %304 = vst.msk [vmem:[%s302] sm:$0xff] %vm303, %v300
    %s305 = scalar_lea.vmem [#allocation2], 8
    %v306 = vld [vmem:[%s305] sm:$0xff]
    %v307 = vsel %vm201, %v295, 0
    %309 = vmatpush.msra.mxu0 0.0
    %310 = vmatpush.msra.mxu0 0.0
    %311 = vmatpush.msra.mxu0 0.0
    %312 = vmatpush.msra.mxu0 0.0
    %313 = vmatpush.msra.mxu0 0.0
    %314 = vmatpush.msra.mxu0 0.0
    %315 = vmatpush.msra.mxu0 0.0
    %316 = vmatpush.msra.mxu0 0.0
    %317 = vmatpush.msra.mxu0 0.0
    %318 = vmatpush.msra.mxu0 0.0
    %319 = vmatpush.msra.mxu0 0.0
    %320 = vmatpush.msra.mxu0 0.0
    %321 = vmatpush.msra.mxu0 %v189
    %322 = vmatpush.msra.mxu0 %v188
    %323 = vmatpush.msra.mxu0 %v187
    %324 = vmatpush.msra.mxu0 %v186
    %325 = vmatmul.f32.gmra.mxu0 %v307
    %v326 = vpop.f32.mrf.mxu0
    %v327 = vadd.f32 0.0, %v326
    %328 = vdwg.mxu0
    %v329 = vadd.f32 %v306, %v327
    %v330 = vmul.f32 %v329, %v199
    %v331 = vtanh.pop %v330
    %v332 = vadd.f32 %v331, 1.0
    %v333 = vmul.f32 %v332, 0.5
    %v334 = vsel %vm198, %v331, %v333
    %v335 = vmul.f32 %v334, %v241
    %337 = vrot.lane.b32.xlu0 %v334, 64
    %v338 = vpop.permute.xlu0 %337
    %v340 = vmul.f32 %v334, %v338
    %342 = vrot.lane.b32.xlu0 %v340, 32
    %v343 = vpop.permute.xlu0 %342
    %v345 = vadd.f32 %v335, %v343
    %v346 = vtanh.pop %v345
    %348 = vrot.lane.b32.xlu0 %v346, 64
    %v349 = vpop.permute.xlu0 %348
    %v351 = vmul.f32 %v334, %v349
    %s352 = scalar_lea.vmem [#allocation3], 48
    %v353 = vld [vmem:[%s352] sm:$0xff]
    %354 = vrot.lane.b32.xlu0 %v292, 32
    %v355 = vpop.permute.xlu0 %354
    %v356 = vsel %vm201, %v355, 0
    %358 = vmatpush.msra.mxu0 0.0
    %359 = vmatpush.msra.mxu0 0.0
    %360 = vmatpush.msra.mxu0 0.0
    %361 = vmatpush.msra.mxu0 0.0
    %362 = vmatpush.msra.mxu0 0.0
    %363 = vmatpush.msra.mxu0 0.0
    %364 = vmatpush.msra.mxu0 0.0
    %365 = vmatpush.msra.mxu0 0.0
    %366 = vmatpush.msra.mxu0 0.0
    %367 = vmatpush.msra.mxu0 0.0
    %368 = vmatpush.msra.mxu0 0.0
    %369 = vmatpush.msra.mxu0 0.0
    %370 = vmatpush.msra.mxu0 %v193
    %371 = vmatpush.msra.mxu0 %v192
    %372 = vmatpush.msra.mxu0 %v191
    %373 = vmatpush.msra.mxu0 %v190
    %374 = vmatmul.f32.gmra.mxu0 %v356
    %v375 = vpop.f32.mrf.mxu0
    %v376 = vadd.f32 0.0, %v375
    %377 = vdwg.mxu0
    %v378 = vadd.f32 %v353, %v376
    %v379 = vmul.f32 %v378, %v199
    %v380 = vtanh.pop %v379
    %v381 = vadd.f32 %v380, 1.0
    %v382 = vmul.f32 %v381, 0.5
    %v383 = vsel %vm198, %v380, %v382
    %v384 = vmul.f32 %v383, %v286
    %386 = vrot.lane.b32.xlu0 %v383, 64
    %v387 = vpop.permute.xlu0 %386
    %v389 = vmul.f32 %v383, %v387
    %391 = vrot.lane.b32.xlu0 %v389, 32
    %v392 = vpop.permute.xlu0 %391
    %v394 = vadd.f32 %v384, %v392
    %v395 = vtanh.pop %v394
    %397 = vrot.lane.b32.xlu0 %v395, 64
    %v398 = vpop.permute.xlu0 %397
    %v400 = vmul.f32 %v383, %v398
    %402 = vrot.lane.b32.xlu0 %v351, 32
    %v403 = vpop.permute.xlu0 %402
    %s405 = scalar_lea.vmem [#allocation7], 8
    %406 = vst.msk [vmem:[%s405] sm:$0xff] %vm201, %v403
    %408 = vrot.lane.b32.xlu0 %v400, 64
    %v409 = vpop.permute.xlu0 %408
    %s411 = scalar_lea.vmem [#allocation7], 48
    %412 = vst.msk [vmem:[%s411] sm:$0xff] %vm303, %v409
    %s413 = scalar_lea.vmem [#allocation2], 16
    %v414 = vld [vmem:[%s413] sm:$0xff]
    %v415 = vsel %vm201, %v403, 0
    %417 = vmatpush.msra.mxu0 0.0
    %418 = vmatpush.msra.mxu0 0.0
    %419 = vmatpush.msra.mxu0 0.0
    %420 = vmatpush.msra.mxu0 0.0
    %421 = vmatpush.msra.mxu0 0.0
    %422 = vmatpush.msra.mxu0 0.0
    %423 = vmatpush.msra.mxu0 0.0
    %424 = vmatpush.msra.mxu0 0.0
    %425 = vmatpush.msra.mxu0 0.0
    %426 = vmatpush.msra.mxu0 0.0
    %427 = vmatpush.msra.mxu0 0.0
    %428 = vmatpush.msra.mxu0 0.0
    %429 = vmatpush.msra.mxu0 %v189
    %430 = vmatpush.msra.mxu0 %v188
    %431 = vmatpush.msra.mxu0 %v187
    %432 = vmatpush.msra.mxu0 %v186
    %433 = vmatmul.f32.gmra.mxu0 %v415
    %v434 = vpop.f32.mrf.mxu0
    %v435 = vadd.f32 0.0, %v434
    %436 = vdwg.mxu0
    %v437 = vadd.f32 %v414, %v435
    %v438 = vmul.f32 %v437, %v199
    %v439 = vtanh.pop %v438
    %v440 = vadd.f32 %v439, 1.0
    %v441 = vmul.f32 %v440, 0.5
    %v442 = vsel %vm198, %v439, %v441
    %v443 = vmul.f32 %v442, %v345
    %445 = vrot.lane.b32.xlu0 %v442, 64
    %v446 = vpop.permute.xlu0 %445
    %v448 = vmul.f32 %v442, %v446
    %450 = vrot.lane.b32.xlu0 %v448, 32
    %v451 = vpop.permute.xlu0 %450
    %v453 = vadd.f32 %v443, %v451
    %v454 = vtanh.pop %v453
    %456 = vrot.lane.b32.xlu0 %v454, 64
    %v457 = vpop.permute.xlu0 %456
    %v459 = vmul.f32 %v442, %v457
    %s460 = scalar_lea.vmem [#allocation3], 40
    %v461 = vld [vmem:[%s460] sm:$0xff]
    %462 = vrot.lane.b32.xlu0 %v400, 32
    %v463 = vpop.permute.xlu0 %462
    %v464 = vsel %vm201, %v463, 0
    %466 = vmatpush.msra.mxu0 0.0
    %467 = vmatpush.msra.mxu0 0.0
    %468 = vmatpush.msra.mxu0 0.0
    %469 = vmatpush.msra.mxu0 0.0
    %470 = vmatpush.msra.mxu0 0.0
    %471 = vmatpush.msra.mxu0 0.0
    %472 = vmatpush.msra.mxu0 0.0
    %473 = vmatpush.msra.mxu0 0.0
    %474 = vmatpush.msra.mxu0 0.0
    %475 = vmatpush.msra.mxu0 0.0
    %476 = vmatpush.msra.mxu0 0.0
    %477 = vmatpush.msra.mxu0 0.0
    %478 = vmatpush.msra.mxu0 %v193
    %479 = vmatpush.msra.mxu0 %v192
    %480 = vmatpush.msra.mxu0 %v191
    %481 = vmatpush.msra.mxu0 %v190
    %482 = vmatmul.f32.gmra.mxu0 %v464
    %v483 = vpop.f32.mrf.mxu0
    %v484 = vadd.f32 0.0, %v483
    %485 = vdwg.mxu0
    %v486 = vadd.f32 %v461, %v484
    %v487 = vmul.f32 %v486, %v199
    %v488 = vtanh.pop %v487
    %v489 = vadd.f32 %v488, 1.0
    %v490 = vmul.f32 %v489, 0.5
    %v491 = vsel %vm198, %v488, %v490
    %v492 = vmul.f32 %v491, %v394
    %494 = vrot.lane.b32.xlu0 %v491, 64
    %v495 = vpop.permute.xlu0 %494
    %v497 = vmul.f32 %v491, %v495
    %499 = vrot.lane.b32.xlu0 %v497, 32
    %v500 = vpop.permute.xlu0 %499
    %v502 = vadd.f32 %v492, %v500
    %v503 = vtanh.pop %v502
    %505 = vrot.lane.b32.xlu0 %v503, 64
    %v506 = vpop.permute.xlu0 %505
    %v508 = vmul.f32 %v491, %v506
    %510 = vrot.lane.b32.xlu0 %v459, 32
    %v511 = vpop.permute.xlu0 %510
    %s513 = scalar_lea.vmem [#allocation7], 16
    %514 = vst.msk [vmem:[%s513] sm:$0xff] %vm201, %v511
    %516 = vrot.lane.b32.xlu0 %v508, 64
    %v517 = vpop.permute.xlu0 %516
    %s519 = scalar_lea.vmem [#allocation7], 40
    %520 = vst.msk [vmem:[%s519] sm:$0xff] %vm303, %v517
    %s521 = scalar_lea.vmem [#allocation2], 24
    %v522 = vld [vmem:[%s521] sm:$0xff]
    %v523 = vsel %vm201, %v511, 0
    %525 = vmatpush.msra.mxu0 0.0
    %526 = vmatpush.msra.mxu0 0.0
    %527 = vmatpush.msra.mxu0 0.0
    %528 = vmatpush.msra.mxu0 0.0
    %529 = vmatpush.msra.mxu0 0.0
    %530 = vmatpush.msra.mxu0 0.0
    %531 = vmatpush.msra.mxu0 0.0
    %532 = vmatpush.msra.mxu0 0.0
    %533 = vmatpush.msra.mxu0 0.0
    %534 = vmatpush.msra.mxu0 0.0
    %535 = vmatpush.msra.mxu0 0.0
    %536 = vmatpush.msra.mxu0 0.0
    %537 = vmatpush.msra.mxu0 %v189
    %538 = vmatpush.msra.mxu0 %v188
    %539 = vmatpush.msra.mxu0 %v187
    %540 = vmatpush.msra.mxu0 %v186
    %541 = vmatmul.f32.gmra.mxu0 %v523
    %v542 = vpop.f32.mrf.mxu0
    %v543 = vadd.f32 0.0, %v542
    %544 = vdwg.mxu0
    %v545 = vadd.f32 %v522, %v543
    %v546 = vmul.f32 %v545, %v199
    %v547 = vtanh.pop %v546
    %v548 = vadd.f32 %v547, 1.0
    %v549 = vmul.f32 %v548, 0.5
    %v550 = vsel %vm198, %v547, %v549
    %v551 = vmul.f32 %v550, %v453
    %553 = vrot.lane.b32.xlu0 %v550, 64
    %v554 = vpop.permute.xlu0 %553
    %v556 = vmul.f32 %v550, %v554
    %558 = vrot.lane.b32.xlu0 %v556, 32
    %v559 = vpop.permute.xlu0 %558
    %v561 = vadd.f32 %v551, %v559
    %v562 = vtanh.pop %v561
    %564 = vrot.lane.b32.xlu0 %v562, 64
    %v565 = vpop.permute.xlu0 %564
    %v567 = vmul.f32 %v550, %v565
    %s568 = scalar_lea.vmem [#allocation3], 32
    %v569 = vld [vmem:[%s568] sm:$0xff]
    %570 = vrot.lane.b32.xlu0 %v508, 32
    %v571 = vpop.permute.xlu0 %570
    %v572 = vsel %vm201, %v571, 0
    %574 = vmatpush.msra.mxu0 0.0
    %575 = vmatpush.msra.mxu0 0.0
    %576 = vmatpush.msra.mxu0 0.0
    %577 = vmatpush.msra.mxu0 0.0
    %578 = vmatpush.msra.mxu0 0.0
    %579 = vmatpush.msra.mxu0 0.0
    %580 = vmatpush.msra.mxu0 0.0
    %581 = vmatpush.msra.mxu0 0.0
    %582 = vmatpush.msra.mxu0 0.0
    %583 = vmatpush.msra.mxu0 0.0
    %584 = vmatpush.msra.mxu0 0.0
    %585 = vmatpush.msra.mxu0 0.0
    %586 = vmatpush.msra.mxu0 %v193
    %587 = vmatpush.msra.mxu0 %v192
    %588 = vmatpush.msra.mxu0 %v191
    %589 = vmatpush.msra.mxu0 %v190
    %590 = vmatmul.f32.gmra.mxu0 %v572
    %v591 = vpop.f32.mrf.mxu0
    %v592 = vadd.f32 0.0, %v591
    %593 = vdwg.mxu0
    %v594 = vadd.f32 %v569, %v592
    %v595 = vmul.f32 %v594, %v199
    %v596 = vtanh.pop %v595
    %v597 = vadd.f32 %v596, 1.0
    %v598 = vmul.f32 %v597, 0.5
    %v599 = vsel %vm198, %v596, %v598
    %v600 = vmul.f32 %v599, %v502
    %602 = vrot.lane.b32.xlu0 %v599, 64
    %v603 = vpop.permute.xlu0 %602
    %v605 = vmul.f32 %v599, %v603
    %607 = vrot.lane.b32.xlu0 %v605, 32
    %v608 = vpop.permute.xlu0 %607
    %v610 = vadd.f32 %v600, %v608
    %v611 = vtanh.pop %v610
    %613 = vrot.lane.b32.xlu0 %v611, 64
    %v614 = vpop.permute.xlu0 %613
    %v616 = vmul.f32 %v599, %v614
    %618 = vrot.lane.b32.xlu0 %v567, 32
    %v619 = vpop.permute.xlu0 %618
    %s621 = scalar_lea.vmem [#allocation7], 24
    %622 = vst.msk [vmem:[%s621] sm:$0xff] %vm201, %v619
    %624 = vrot.lane.b32.xlu0 %v616, 64
    %v625 = vpop.permute.xlu0 %624
    %s627 = scalar_lea.vmem [#allocation7], 32
    %628 = vst.msk [vmem:[%s627] sm:$0xff] %vm303, %v625
    %s629 = scalar_lea.vmem [#allocation2], 32
    %v630 = vld [vmem:[%s629] sm:$0xff]
    %v631 = vsel %vm201, %v619, 0
    %633 = vmatpush.msra.mxu0 0.0
    %634 = vmatpush.msra.mxu0 0.0
    %635 = vmatpush.msra.mxu0 0.0
    %636 = vmatpush.msra.mxu0 0.0
    %637 = vmatpush.msra.mxu0 0.0
    %638 = vmatpush.msra.mxu0 0.0
    %639 = vmatpush.msra.mxu0 0.0
    %640 = vmatpush.msra.mxu0 0.0
    %641 = vmatpush.msra.mxu0 0.0
    %642 = vmatpush.msra.mxu0 0.0
    %643 = vmatpush.msra.mxu0 0.0
    %644 = vmatpush.msra.mxu0 0.0
    %645 = vmatpush.msra.mxu0 %v189
    %646 = vmatpush.msra.mxu0 %v188
    %647 = vmatpush.msra.mxu0 %v187
    %648 = vmatpush.msra.mxu0 %v186
    %649 = vmatmul.f32.gmra.mxu0 %v631
    %v650 = vpop.f32.mrf.mxu0
    %v651 = vadd.f32 0.0, %v650
    %652 = vdwg.mxu0
    %v653 = vadd.f32 %v630, %v651
    %v654 = vmul.f32 %v653, %v199
    %v655 = vtanh.pop %v654
    %v656 = vadd.f32 %v655, 1.0
    %v657 = vmul.f32 %v656, 0.5
    %v658 = vsel %vm198, %v655, %v657
    %v659 = vmul.f32 %v658, %v561
    %661 = vrot.lane.b32.xlu0 %v658, 64
    %v662 = vpop.permute.xlu0 %661
    %v664 = vmul.f32 %v658, %v662
    %666 = vrot.lane.b32.xlu0 %v664, 32
    %v667 = vpop.permute.xlu0 %666
    %v669 = vadd.f32 %v659, %v667
    %v670 = vtanh.pop %v669
    %672 = vrot.lane.b32.xlu0 %v670, 64
    %v673 = vpop.permute.xlu0 %672
    %v675 = vmul.f32 %v658, %v673
    %s676 = scalar_lea.vmem [#allocation3], 24
    %v677 = vld [vmem:[%s676] sm:$0xff]
    %678 = vrot.lane.b32.xlu0 %v616, 32
    %v679 = vpop.permute.xlu0 %678
    %v680 = vsel %vm201, %v679, 0
    %682 = vmatpush.msra.mxu0 0.0
    %683 = vmatpush.msra.mxu0 0.0
    %684 = vmatpush.msra.mxu0 0.0
    %685 = vmatpush.msra.mxu0 0.0
    %686 = vmatpush.msra.mxu0 0.0
    %687 = vmatpush.msra.mxu0 0.0
    %688 = vmatpush.msra.mxu0 0.0
    %689 = vmatpush.msra.mxu0 0.0
    %690 = vmatpush.msra.mxu0 0.0
    %691 = vmatpush.msra.mxu0 0.0
    %692 = vmatpush.msra.mxu0 0.0
    %693 = vmatpush.msra.mxu0 0.0
    %694 = vmatpush.msra.mxu0 %v193
    %695 = vmatpush.msra.mxu0 %v192
    %696 = vmatpush.msra.mxu0 %v191
    %697 = vmatpush.msra.mxu0 %v190
    %698 = vmatmul.f32.gmra.mxu0 %v680
    %v699 = vpop.f32.mrf.mxu0
    %v700 = vadd.f32 0.0, %v699
    %701 = vdwg.mxu0
    %v702 = vadd.f32 %v677, %v700
    %v703 = vmul.f32 %v702, %v199
    %v704 = vtanh.pop %v703
    %v705 = vadd.f32 %v704, 1.0
    %v706 = vmul.f32 %v705, 0.5
    %v707 = vsel %vm198, %v704, %v706
    %v708 = vmul.f32 %v707, %v610
    %710 = vrot.lane.b32.xlu0 %v707, 64
    %v711 = vpop.permute.xlu0 %710
    %v713 = vmul.f32 %v707, %v711
    %715 = vrot.lane.b32.xlu0 %v713, 32
    %v716 = vpop.permute.xlu0 %715
    %v718 = vadd.f32 %v708, %v716
    %v719 = vtanh.pop %v718
    %721 = vrot.lane.b32.xlu0 %v719, 64
    %v722 = vpop.permute.xlu0 %721
    %v724 = vmul.f32 %v707, %v722
    %726 = vrot.lane.b32.xlu0 %v675, 32
    %v727 = vpop.permute.xlu0 %726
    %729 = vst.msk [vmem:[%s627] sm:$0xff] %vm201, %v727
    %731 = vrot.lane.b32.xlu0 %v724, 64
    %v732 = vpop.permute.xlu0 %731
    %734 = vst.msk [vmem:[%s621] sm:$0xff] %vm303, %v732
    %s735 = scalar_lea.vmem [#allocation2], 40
    %v736 = vld [vmem:[%s735] sm:$0xff]
    %v737 = vsel %vm201, %v727, 0
    %739 = vmatpush.msra.mxu0 0.0
    %740 = vmatpush.msra.mxu0 0.0
    %741 = vmatpush.msra.mxu0 0.0
    %742 = vmatpush.msra.mxu0 0.0
    %743 = vmatpush.msra.mxu0 0.0
    %744 = vmatpush.msra.mxu0 0.0
    %745 = vmatpush.msra.mxu0 0.0
    %746 = vmatpush.msra.mxu0 0.0
    %747 = vmatpush.msra.mxu0 0.0
    %748 = vmatpush.msra.mxu0 0.0
    %749 = vmatpush.msra.mxu0 0.0
    %750 = vmatpush.msra.mxu0 0.0
    %751 = vmatpush.msra.mxu0 %v189
    %752 = vmatpush.msra.mxu0 %v188
    %753 = vmatpush.msra.mxu0 %v187
    %754 = vmatpush.msra.mxu0 %v186
    %755 = vmatmul.f32.gmra.mxu0 %v737
    %v756 = vpop.f32.mrf.mxu0
    %v757 = vadd.f32 0.0, %v756
    %758 = vdwg.mxu0
    %v759 = vadd.f32 %v736, %v757
    %v760 = vmul.f32 %v759, %v199
    %v761 = vtanh.pop %v760
    %v762 = vadd.f32 %v761, 1.0
    %v763 = vmul.f32 %v762, 0.5
    %v764 = vsel %vm198, %v761, %v763
    %v765 = vmul.f32 %v764, %v669
    %767 = vrot.lane.b32.xlu0 %v764, 64
    %v768 = vpop.permute.xlu0 %767
    %v770 = vmul.f32 %v764, %v768
    %772 = vrot.lane.b32.xlu0 %v770, 32
    %v773 = vpop.permute.xlu0 %772
    %v775 = vadd.f32 %v765, %v773
    %v776 = vtanh.pop %v775
    %778 = vrot.lane.b32.xlu0 %v776, 64
    %v779 = vpop.permute.xlu0 %778
    %v781 = vmul.f32 %v764, %v779
    %s782 = scalar_lea.vmem [#allocation3], 16
    %v783 = vld [vmem:[%s782] sm:$0xff]
    %784 = vrot.lane.b32.xlu0 %v724, 32
    %v785 = vpop.permute.xlu0 %784
    %v786 = vsel %vm201, %v785, 0
    %788 = vmatpush.msra.mxu0 0.0
    %789 = vmatpush.msra.mxu0 0.0
    %790 = vmatpush.msra.mxu0 0.0
    %791 = vmatpush.msra.mxu0 0.0
    %792 = vmatpush.msra.mxu0 0.0
    %793 = vmatpush.msra.mxu0 0.0
    %794 = vmatpush.msra.mxu0 0.0
    %795 = vmatpush.msra.mxu0 0.0
    %796 = vmatpush.msra.mxu0 0.0
    %797 = vmatpush.msra.mxu0 0.0
    %798 = vmatpush.msra.mxu0 0.0
    %799 = vmatpush.msra.mxu0 0.0
    %800 = vmatpush.msra.mxu0 %v193
    %801 = vmatpush.msra.mxu0 %v192
    %802 = vmatpush.msra.mxu0 %v191
    %803 = vmatpush.msra.mxu0 %v190
    %804 = vmatmul.f32.gmra.mxu0 %v786
    %v805 = vpop.f32.mrf.mxu0
    %v806 = vadd.f32 0.0, %v805
    %807 = vdwg.mxu0
    %v808 = vadd.f32 %v783, %v806
    %v809 = vmul.f32 %v808, %v199
    %v810 = vtanh.pop %v809
    %v811 = vadd.f32 %v810, 1.0
    %v812 = vmul.f32 %v811, 0.5
    %v813 = vsel %vm198, %v810, %v812
    %v814 = vmul.f32 %v813, %v718
    %816 = vrot.lane.b32.xlu0 %v813, 64
    %v817 = vpop.permute.xlu0 %816
    %v819 = vmul.f32 %v813, %v817
    %821 = vrot.lane.b32.xlu0 %v819, 32
    %v822 = vpop.permute.xlu0 %821
    %v824 = vadd.f32 %v814, %v822
    %v825 = vtanh.pop %v824
    %827 = vrot.lane.b32.xlu0 %v825, 64
    %v828 = vpop.permute.xlu0 %827
    %v830 = vmul.f32 %v813, %v828
    %832 = vrot.lane.b32.xlu0 %v781, 32
    %v833 = vpop.permute.xlu0 %832
    %835 = vst.msk [vmem:[%s519] sm:$0xff] %vm201, %v833
    %837 = vrot.lane.b32.xlu0 %v830, 64
    %v838 = vpop.permute.xlu0 %837
    %840 = vst.msk [vmem:[%s513] sm:$0xff] %vm303, %v838
    %s841 = scalar_lea.vmem [#allocation2], 48
    %v842 = vld [vmem:[%s841] sm:$0xff]
    %v843 = vsel %vm201, %v833, 0
    %845 = vmatpush.msra.mxu0 0.0
    %846 = vmatpush.msra.mxu0 0.0
    %847 = vmatpush.msra.mxu0 0.0
    %848 = vmatpush.msra.mxu0 0.0
    %849 = vmatpush.msra.mxu0 0.0
    %850 = vmatpush.msra.mxu0 0.0
    %851 = vmatpush.msra.mxu0 0.0
    %852 = vmatpush.msra.mxu0 0.0
    %853 = vmatpush.msra.mxu0 0.0
    %854 = vmatpush.msra.mxu0 0.0
    %855 = vmatpush.msra.mxu0 0.0
    %856 = vmatpush.msra.mxu0 0.0
    %857 = vmatpush.msra.mxu0 %v189
    %858 = vmatpush.msra.mxu0 %v188
    %859 = vmatpush.msra.mxu0 %v187
    %860 = vmatpush.msra.mxu0 %v186
    %861 = vmatmul.f32.gmra.mxu0 %v843
    %v862 = vpop.f32.mrf.mxu0
    %v863 = vadd.f32 0.0, %v862
    %864 = vdwg.mxu0
    %v865 = vadd.f32 %v842, %v863
    %v866 = vmul.f32 %v865, %v199
    %v867 = vtanh.pop %v866
    %v868 = vadd.f32 %v867, 1.0
    %v869 = vmul.f32 %v868, 0.5
    %v870 = vsel %vm198, %v867, %v869
    %v871 = vmul.f32 %v870, %v775
    %873 = vrot.lane.b32.xlu0 %v870, 64
    %v874 = vpop.permute.xlu0 %873
    %v876 = vmul.f32 %v870, %v874
    %878 = vrot.lane.b32.xlu0 %v876, 32
    %v879 = vpop.permute.xlu0 %878
    %v881 = vadd.f32 %v871, %v879
    %v882 = vtanh.pop %v881
    %884 = vrot.lane.b32.xlu0 %v882, 64
    %v885 = vpop.permute.xlu0 %884
    %v887 = vmul.f32 %v870, %v885
    %s888 = scalar_lea.vmem [#allocation3], 8
    %v889 = vld [vmem:[%s888] sm:$0xff]
    %890 = vrot.lane.b32.xlu0 %v830, 32
    %v891 = vpop.permute.xlu0 %890
    %v892 = vsel %vm201, %v891, 0
    %894 = vmatpush.msra.mxu0 0.0
    %895 = vmatpush.msra.mxu0 0.0
    %896 = vmatpush.msra.mxu0 0.0
    %897 = vmatpush.msra.mxu0 0.0
    %898 = vmatpush.msra.mxu0 0.0
    %899 = vmatpush.msra.mxu0 0.0
    %900 = vmatpush.msra.mxu0 0.0
    %901 = vmatpush.msra.mxu0 0.0
    %902 = vmatpush.msra.mxu0 0.0
    %903 = vmatpush.msra.mxu0 0.0
    %904 = vmatpush.msra.mxu0 0.0
    %905 = vmatpush.msra.mxu0 0.0
    %906 = vmatpush.msra.mxu0 %v193
    %907 = vmatpush.msra.mxu0 %v192
    %908 = vmatpush.msra.mxu0 %v191
    %909 = vmatpush.msra.mxu0 %v190
    %910 = vmatmul.f32.gmra.mxu0 %v892
    %v911 = vpop.f32.mrf.mxu0
    %v912 = vadd.f32 0.0, %v911
    %913 = vdwg.mxu0
    %v914 = vadd.f32 %v889, %v912
    %v915 = vmul.f32 %v914, %v199
    %v916 = vtanh.pop %v915
    %v917 = vadd.f32 %v916, 1.0
    %v918 = vmul.f32 %v917, 0.5
    %v919 = vsel %vm198, %v916, %v918
    %v920 = vmul.f32 %v919, %v824
    %922 = vrot.lane.b32.xlu0 %v919, 64
    %v923 = vpop.permute.xlu0 %922
    %v925 = vmul.f32 %v919, %v923
    %927 = vrot.lane.b32.xlu0 %v925, 32
    %v928 = vpop.permute.xlu0 %927
    %v930 = vadd.f32 %v920, %v928
    %v931 = vtanh.pop %v930
    %933 = vrot.lane.b32.xlu0 %v931, 64
    %v934 = vpop.permute.xlu0 %933
    %v936 = vmul.f32 %v919, %v934
    %938 = vrot.lane.b32.xlu0 %v887, 32
    %v939 = vpop.permute.xlu0 %938
    %941 = vst.msk [vmem:[%s411] sm:$0xff] %vm201, %v939
    %943 = vrot.lane.b32.xlu0 %v936, 64
    %v944 = vpop.permute.xlu0 %943
    %946 = vst.msk [vmem:[%s405] sm:$0xff] %vm303, %v944
    %s947 = scalar_lea.vmem [#allocation2], 56
    %v948 = vld [vmem:[%s947] sm:$0xff]
    %v949 = vsel %vm201, %v939, 0
    %951 = vmatpush.msra.mxu0 0.0
    %952 = vmatpush.msra.mxu0 0.0
    %953 = vmatpush.msra.mxu0 0.0
    %954 = vmatpush.msra.mxu0 0.0
    %955 = vmatpush.msra.mxu0 0.0
    %956 = vmatpush.msra.mxu0 0.0
    %957 = vmatpush.msra.mxu0 0.0
    %958 = vmatpush.msra.mxu0 0.0
    %959 = vmatpush.msra.mxu0 0.0
    %960 = vmatpush.msra.mxu0 0.0
    %961 = vmatpush.msra.mxu0 0.0
    %962 = vmatpush.msra.mxu0 0.0
    %963 = vmatpush.msra.mxu0 %v189
    %964 = vmatpush.msra.mxu0 %v188
    %965 = vmatpush.msra.mxu0 %v187
    %966 = vmatpush.msra.mxu0 %v186
    %967 = vmatmul.f32.gmra.mxu0 %v949
    %v968 = vpop.f32.mrf.mxu0
    %v969 = vadd.f32 0.0, %v968
    %970 = vdwg.mxu0
    %v971 = vadd.f32 %v948, %v969
    %v972 = vmul.f32 %v971, %v199
    %v973 = vtanh.pop %v972
    %v974 = vadd.f32 %v973, 1.0
    %v975 = vmul.f32 %v974, 0.5
    %v976 = vsel %vm198, %v973, %v975
    %v977 = vmul.f32 %v976, %v881
    %979 = vrot.lane.b32.xlu0 %v976, 64
    %v980 = vpop.permute.xlu0 %979
    %v982 = vmul.f32 %v976, %v980
    %984 = vrot.lane.b32.xlu0 %v982, 32
    %v985 = vpop.permute.xlu0 %984
    %v987 = vadd.f32 %v977, %v985
    %v988 = vtanh.pop %v987
    %990 = vrot.lane.b32.xlu0 %v988, 64
    %v991 = vpop.permute.xlu0 %990
    %v993 = vmul.f32 %v976, %v991
    %v994 = vld [vmem:[#allocation3] sm:$0xff]
    %995 = vrot.lane.b32.xlu0 %v936, 32
    %v996 = vpop.permute.xlu0 %995
    %v997 = vsel %vm201, %v996, 0
    %999 = vmatpush.msra.mxu0 0.0
    %1000 = vmatpush.msra.mxu0 0.0
    %1001 = vmatpush.msra.mxu0 0.0
    %1002 = vmatpush.msra.mxu0 0.0
    %1003 = vmatpush.msra.mxu0 0.0
    %1004 = vmatpush.msra.mxu0 0.0
    %1005 = vmatpush.msra.mxu0 0.0
    %1006 = vmatpush.msra.mxu0 0.0
    %1007 = vmatpush.msra.mxu0 0.0
    %1008 = vmatpush.msra.mxu0 0.0
    %1009 = vmatpush.msra.mxu0 0.0
    %1010 = vmatpush.msra.mxu0 0.0
    %1011 = vmatpush.msra.mxu0 %v193
    %1012 = vmatpush.msra.mxu0 %v192
    %1013 = vmatpush.msra.mxu0 %v191
    %1014 = vmatpush.msra.mxu0 %v190
    %1015 = vmatmul.f32.gmra.mxu0 %v997
    %v1016 = vpop.f32.mrf.mxu0
    %v1017 = vadd.f32 0.0, %v1016
    %1018 = vdwg.mxu0
    %v1019 = vadd.f32 %v994, %v1017
    %v1020 = vmul.f32 %v1019, %v199
    %v1021 = vtanh.pop %v1020
    %v1022 = vadd.f32 %v1021, 1.0
    %v1023 = vmul.f32 %v1022, 0.5
    %v1024 = vsel %vm198, %v1021, %v1023
    %v1025 = vmul.f32 %v1024, %v930
    %1027 = vrot.lane.b32.xlu0 %v1024, 64
    %v1028 = vpop.permute.xlu0 %1027
    %v1030 = vmul.f32 %v1024, %v1028
    %1032 = vrot.lane.b32.xlu0 %v1030, 32
    %v1033 = vpop.permute.xlu0 %1032
    %v1035 = vadd.f32 %v1025, %v1033
    %v1036 = vtanh.pop %v1035
    %1038 = vrot.lane.b32.xlu0 %v1036, 64
    %v1039 = vpop.permute.xlu0 %1038
    %v1041 = vmul.f32 %v1024, %v1039
    %1043 = vrot.lane.b32.xlu0 %v993, 32
    %v1044 = vpop.permute.xlu0 %1043
    %1046 = vst.msk [vmem:[%s302] sm:$0xff] %vm201, %v1044
    %1048 = vrot.lane.b32.xlu0 %v1041, 64
    %v1049 = vpop.permute.xlu0 %1048
    %1051 = vst.msk [vmem:[#allocation7] sm:$0xff] %vm303, %v1049
    // Predicated region
    $region34: #{tpu_custom_call.1} parent=1 // pred_check
      _
    $region35: #{tpu_custom_call.1} parent=1 // pred_check_branch
      %1053 = sbr.rel (0) target = $region37
    $region36: #{tpu_custom_call.1} parent=1 // pred_region
      %1055 = vsyncadd [#allocation6], 0
      %s1056 = sshll.u32 [#allocation7], 4
      %s1057 = int_to_ptr.vmem [resolvable:$true] %s1056
      %s1058 = sshll.u32 %s7, 4
      %s1059 = int_to_ptr.hbm [resolvable:$true] %s1058
      %1064 = dma.vmem_to_hbm [thread:$0]  %s1057, 1024, %s1059, [#allocation6], 128, 128, 8
    $region37: #{tpu_custom_call.1} parent=1 // pred_fallthru
      _
    // Predicated region
    $region38: #{tpu_custom_call.1} parent=1 // pred_check
      _
    $region39: #{tpu_custom_call.1} parent=1 // pred_check_branch
      %1066 = sbr.rel (0) target = $region41
    $region40: #{tpu_custom_call.1} parent=1 // pred_region
      %1068 = dma.done [#allocation6], 1024
    $region41: #{tpu_custom_call.1} parent=1 // pred_fallthru
      _
    %1069 = vsyncpa [#allocation5], 1
    %1070 = vsyncpa [#allocation6], 1

</llo_original>
